<compile_context>
chip_gen: v5e
topology: v5e:2x2
jax: 0.10.0
libtpu: 0.0.40
codegen_flags: <defaults>
</compile_context>

<pallas_src>
import functools

import jax
import jax.numpy as jnp
from jax.experimental import pallas as pl
from jax.experimental.pallas import tpu as pltpu


# --------------------------------------------------------------------------
# Fused Pallas kernel: whole network for Bb lane-packed samples per grid step.
# --------------------------------------------------------------------------

def _eeg_inception_mi_kernel(
        x_ref, bigmask_ref, pneg_ref, poolmat_ref,
        e1w_ref, e1b_ref, inc0_w_ref, inc0_b_ref,
        im_bw_ref, im_bb_ref, im_w_ref, im_b_ref,
        e2w_ref, e2b_ref, fcw_ref, fcb_ref,
        o_ref,
        *, n_filters, n_convs, kernel_unit, kmax, n_im1, n_im2, lanes):
    f32 = jnp.float32
    bf16 = jnp.bfloat16
    nf = n_filters
    inter = (n_convs + 1) * nf
    pmax = kmax // 2
    ppool = kernel_unit // 2

    # Hoisted, host-built constants (loaded once per grid step).
    big_mask = bigmask_ref[...]        # (kmax*nf, lanes) f32 in {0,1}
    pneg = pneg_ref[...]               # (kernel_unit, lanes) f32 in {0,-1e30}

    def shifted(v, s):
        # v[:, u + s] for every lane u (cyclic); invalid lanes masked by caller.
        if s == 0:
            return v
        return pltpu.roll(v, shift=(-s) % lanes, axis=1)

    def inception_tail(a, x1, w, b):
        """Everything after the bottleneck: branches + maxpool + 1 block matmul."""
        # All kmax temporal shifts of the bottleneck output stacked along
        # sublanes; the per-sample validity mask gives exact-zero 'same' pad
        # and stops shifts leaking across packed-sample boundaries.
        conv_stack = jnp.concatenate(
            [shifted(x1, j - pmax) for j in range(kmax)], axis=0) * big_mask
        # Stride-1 'same' maxpool of the module input (finite -1e30 additive
        # mask; the unshifted candidate is always valid so the max is finite).
        m = a
        for k in range(kernel_unit):
            if k == ppool:
                continue
            m = jnp.maximum(m, shifted(a, k - ppool) + pneg[k:k + 1, :])
        stacked = jnp.concatenate([conv_stack, m], axis=0)
        # ONE MXU matmul = every temporal-conv branch + the pool 1x1 conv
        # (BN already folded into w/b); ReLU epilogue.
        y = jnp.dot(w, stacked.astype(bf16), preferred_element_type=f32) + b
        return jnp.maximum(y, 0.0)

    def bottleneck(pos, a):
        return jnp.dot(im_bw_ref[pos], a.astype(bf16),
                       preferred_element_type=f32) + im_bb_ref[pos]

    # Position of each non-entry intermediate module's bottleneck weights
    # (module n_im1's bottleneck is fused into the block-2 entry matmul).
    bw_pos, p = {}, 0
    for i in range(n_im1 + n_im2):
        if i != n_im1:
            bw_pos[i] = p
            p += 1

    a0 = x_ref[0]                                                  # (Cin, lanes)

    # ---- block-1 entry: fused [residual-1 ; initial bottleneck] (shared RHS)
    z = jnp.dot(e1w_ref[...], a0.astype(bf16),
                preferred_element_type=f32) + e1b_ref[...]
    res1 = jnp.maximum(z[:inter, :], 0.0)
    out = inception_tail(a0, z[inter:, :], inc0_w_ref[...], inc0_b_ref[...])

    for i in range(n_im1):
        out = inception_tail(out, bottleneck(bw_pos[i], out),
                             im_w_ref[i], im_b_ref[i])
    out = out + res1

    # ---- block-2 entry: fused [residual-2 ; first block-2 bottleneck]
    z = jnp.dot(e2w_ref[...], out.astype(bf16),
                preferred_element_type=f32) + e2b_ref[...]
    res2 = jnp.maximum(z[:inter, :], 0.0)
    out = inception_tail(out, z[inter:, :], im_w_ref[n_im1], im_b_ref[n_im1])

    for i in range(n_im1 + 1, n_im1 + n_im2):
        out = inception_tail(out, bottleneck(bw_pos[i], out),
                             im_w_ref[i], im_b_ref[i])
    out = out + res2

    # ---- head: avg-pool over time and FC as two small MXU matmuls
    pooled = jnp.dot(out.astype(bf16), poolmat_ref[...],
                     preferred_element_type=f32)                    # (inter, Bb)
    logits = jnp.dot(fcw_ref[...], pooled.astype(bf16),
                     preferred_element_type=f32) + fcb_ref[...]     # (ncls, Bb)
    zc = logits - jnp.max(logits, axis=0, keepdims=True)
    o_ref[0] = zc - jnp.log(jnp.sum(jnp.exp(zc), axis=0, keepdims=True))


def eeg_inception_mi_forward(x, kp, *, kernel_unit, n_convs, n_filters,
                             n_im1=2, n_im2=3):
    """x: (B, Cin, T) float32; kp: fused/flattened kernel parameters."""
    B, cin, T = x.shape
    nf = n_filters
    kmax = (2 * (n_convs - 1) + 1) * kernel_unit
    pmax = kmax // 2
    ppool = kernel_unit // 2
    n_classes = kp["fc_b"].shape[0]

    # Pack Bb samples along the lane axis (target 128 lanes per grid step).
    Bb = max(1, 128 // T)
    G = -(-B // Bb)
    Bpad = G * Bb
    xw = x if Bpad == B else jnp.pad(x, ((0, Bpad - B), (0, 0), (0, 0)))
    lanes = Bb * T
    xp = xw.reshape(G, Bb, cin, T).transpose(0, 2, 1, 3).reshape(G, cin, lanes)

    # Host-built shift-validity masks (block-"diagonal" per packed sample),
    # finite -1e30 maxpool masks and the per-sample averaging matrix.
    t_in = jnp.arange(lanes, dtype=jnp.int32) % T
    cshift = jnp.arange(kmax, dtype=jnp.int32)[:, None] - pmax
    cvalid = (t_in[None, :] + cshift >= 0) & (t_in[None, :] + cshift < T)
    big_mask = jnp.repeat(cvalid.astype(jnp.float32), nf, axis=0)   # (kmax*nf, lanes)
    pshift = jnp.arange(kernel_unit, dtype=jnp.int32)[:, None] - ppool
    pvalid = (t_in[None, :] + pshift >= 0) & (t_in[None, :] + pshift < T)
    pneg = jnp.where(pvalid, 0.0, -1e30).astype(jnp.float32)        # (ku, lanes)
    sample_id = jnp.arange(lanes, dtype=jnp.int32) // T
    poolmat = ((sample_id[:, None] == jnp.arange(Bb, dtype=jnp.int32)[None, :])
               .astype(jnp.float32) / T).astype(jnp.bfloat16)       # (lanes, Bb)

    flat = [
        xp, big_mask, pneg, poolmat,
        kp["entry1_w"], kp["entry1_b"], kp["inc0_Wbig"], kp["inc0_bbig"],
        kp["im_bw"], kp["im_bb"], kp["im_Wbig"], kp["im_bbig"],
        kp["entry2_w"], kp["entry2_b"], kp["fc_w"], kp["fc_b"],
    ]
    # x is split over the grid; all other inputs use constant index maps
    # (DMA'd once, VMEM-resident across grid steps).
    in_specs = [pl.BlockSpec((1, cin, lanes), lambda g: (g, 0, 0))]
    for a in flat[1:]:
        in_specs.append(pl.BlockSpec(a.shape, lambda g, _n=a.ndim: (0,) * _n))

    kernel = functools.partial(
        _eeg_inception_mi_kernel, n_filters=nf, n_convs=n_convs,
        kernel_unit=kernel_unit, kmax=kmax, n_im1=n_im1, n_im2=n_im2,
        lanes=lanes)

    out = pl.pallas_call(
        kernel,
        out_shape=jax.ShapeDtypeStruct((G, n_classes, Bb), jnp.float32),
        grid=(G,),
        in_specs=in_specs,
        out_specs=pl.BlockSpec((1, n_classes, Bb), lambda g: (g, 0, 0)),
        compiler_params=pltpu.CompilerParams(
            dimension_semantics=("parallel",)),
    )(*flat)
    # (G, ncls, Bb) -> (B, ncls); tiny XLA transpose outside the kernel.
    return out.transpose(0, 2, 1).reshape(Bpad, n_classes)[:B]


# --------------------------------------------------------------------------
# Parameter construction (BN folding + im2col / block-weight packing)
# --------------------------------------------------------------------------

class _ParamGen:
    def __init__(self, key):
        self._key = key

    def _next(self):
        self._key, sub = jax.random.split(self._key)
        return sub

    def normal(self, shape, scale=0.1):
        return (scale * jax.random.normal(self._next(), shape)).astype(jnp.float32)

    def uniform(self, shape, lo=0.5, hi=1.5):
        return jax.random.uniform(self._next(), shape, jnp.float32, lo, hi)


def _fold_bn(pg, c, eps=1e-5):
    gamma = 1.0 + pg.normal((c,))
    beta = pg.normal((c,))
    mean = pg.normal((c,))
    var = pg.uniform((c,))
    scale = gamma / jnp.sqrt(var + eps)
    shift = beta - mean * scale
    return scale, shift


def _im2col_weight(w, kmax):
    # w: (Cout, Cin, K), PyTorch 'same' conv (odd K) -> (Cout, kmax*Cin) laid
    # out so contraction index k*Cin + c multiplies x[c, t + k - kmax//2].
    cout, cin, K = w.shape
    off = kmax // 2 - K // 2
    wfull = jnp.zeros((cout, kmax, cin), jnp.float32)
    wfull = wfull.at[:, off:off + K, :].set(jnp.transpose(w, (0, 2, 1)))
    return wfull.reshape(cout, kmax * cin)


def make_inception_params(pg, in_ch, n_filters, n_convs, kernel_unit, kmax):
    nf = n_filters
    inter = (n_convs + 1) * nf
    bneck_w = pg.normal((nf, in_ch))
    bneck_b = pg.normal((nf, 1))
    conv_w = [pg.normal((nf, nf, (2 * i + 1) * kernel_unit)) for i in range(n_convs)]
    conv_b = [pg.normal((nf, 1)) for _ in range(n_convs)]
    pool_w = pg.normal((nf, in_ch))
    pool_b = pg.normal((nf, 1))
    scale, shift = _fold_bn(pg, nf * (n_convs + 1))

    # Fold eval-mode BN (per concatenated output channel) into the branch and
    # pool-conv weights/biases.
    conv_wf, conv_bf = [], []
    for i in range(n_convs):
        s = scale[i * nf:(i + 1) * nf]
        sh = shift[i * nf:(i + 1) * nf]
        conv_wf.append(conv_w[i] * s[:, None, None])
        conv_bf.append(conv_b[i] * s[:, None] + sh[:, None])
    sp = scale[n_convs * nf:]
    shp = shift[n_convs * nf:]
    pool_wf = pool_w * sp[:, None]
    pool_bf = pool_b * sp[:, None] + shp[:, None]

    # One block weight: [branch im2col | 0 ; 0 | pool 1x1] so every branch
    # plus the pool conv is a single MXU matmul against the stacked RHS.
    cw = jnp.concatenate([_im2col_weight(w, kmax) for w in conv_wf], axis=0)
    Wbig = jnp.zeros((inter, kmax * nf + in_ch), jnp.float32)
    Wbig = Wbig.at[:n_convs * nf, :kmax * nf].set(cw)
    Wbig = Wbig.at[n_convs * nf:, kmax * nf:].set(pool_wf)
    bbig = jnp.concatenate(conv_bf + [pool_bf], axis=0)

    fused = dict(bw=bneck_w, bb=bneck_b, Wbig=Wbig, bbig=bbig)
    ref = dict(bneck_w=bneck_w, bneck_b=bneck_b,
               conv_w=conv_wf, conv_b=conv_bf,
               pool_w=pool_wf, pool_b=pool_bf)
    return fused, ref


def make_residual_params(pg, in_ch, out_ch):
    w = pg.normal((out_ch, in_ch))
    b = pg.normal((out_ch, 1))
    scale, shift = _fold_bn(pg, out_ch)
    return dict(w=w * scale[:, None], b=b * scale[:, None] + shift[:, None])


def make_params(key, in_channels, n_classes, n_convs, n_filters, kernel_unit,
                n_im1=2, n_im2=3):
    # TODO(synk): even kernel_unit would need asymmetric 'same' padding to
    #             match PyTorch exactly; only the odd case is implemented.
    assert kernel_unit % 2 == 1
    pg = _ParamGen(key)
    bf16 = jnp.bfloat16
    kmax = (2 * (n_convs - 1) + 1) * kernel_unit
    inter = (n_convs + 1) * n_filters

    inc0_f, inc0_r = make_inception_params(pg, in_channels, n_filters, n_convs,
                                           kernel_unit, kmax)
    im1 = [make_inception_params(pg, inter, n_filters, n_convs, kernel_unit, kmax)
           for _ in range(n_im1)]
    res1 = make_residual_params(pg, in_channels, inter)
    im2 = [make_inception_params(pg, inter, n_filters, n_convs, kernel_unit, kmax)
           for _ in range(n_im2)]
    res2 = make_residual_params(pg, inter, inter)
    fc_wT = pg.normal((inter, n_classes))
    fc_b = pg.normal((1, n_classes))

    im_f = [f for f, _ in im1] + [f for f, _ in im2]
    im_r = [r for _, r in im1] + [r for _, r in im2]

    # Fuse matmuls that share the same RHS: [res1 ; initial bottleneck] and
    # [res2 ; first block-2 bottleneck] (residual rows first -> 8-aligned).
    entry1_w = jnp.concatenate([res1["w"], inc0_f["bw"]], axis=0)
    entry1_b = jnp.concatenate([res1["b"], inc0_f["bb"]], axis=0)
    entry2_w = jnp.concatenate([res2["w"], im_f[n_im1]["bw"]], axis=0)
    entry2_b = jnp.concatenate([res2["b"], im_f[n_im1]["bb"]], axis=0)

    non_entry = [i for i in range(n_im1 + n_im2) if i != n_im1]
    kp = dict(
        entry1_w=entry1_w.astype(bf16), entry1_b=entry1_b,
        entry2_w=entry2_w.astype(bf16), entry2_b=entry2_b,
        inc0_Wbig=inc0_f["Wbig"].astype(bf16), inc0_bbig=inc0_f["bbig"],
        im_bw=jnp.stack([im_f[i]["bw"] for i in non_entry]).astype(bf16),
        im_bb=jnp.stack([im_f[i]["bb"] for i in non_entry]),
        im_Wbig=jnp.stack([f["Wbig"] for f in im_f]).astype(bf16),
        im_bbig=jnp.stack([f["bbig"] for f in im_f]),
        fc_w=fc_wT.T.astype(bf16), fc_b=fc_b.T,
    )
    rp = dict(inception=[inc0_r] + im_r, res1=res1, res2=res2,
              fc_wT=fc_wT, fc_b=fc_b)
    return kp, rp


# --------------------------------------------------------------------------
# Pure-JAX reference (un-fused, f32, non-im2col) for correctness checking.
# --------------------------------------------------------------------------

def reference_forward(x, rp, *, kernel_unit, n_convs):
    hi = jax.lax.Precision.HIGHEST

    def conv1x1(a, w, b):
        return jnp.einsum("oc,bct->bot", w, a, precision=hi) + b[None]

    def tconv(a, w, b):
        T = a.shape[2]
        K = w.shape[2]
        pad = K // 2
        ap = jnp.pad(a, ((0, 0), (0, 0), (pad, pad)))
        out = b[None]
        for j in range(K):
            out = out + jnp.einsum("oc,bct->bot", w[:, :, j], ap[:, :, j:j + T],
                                   precision=hi)
        return out

    def maxpool(a, K):
        T = a.shape[2]
        pad = K // 2
        ap = jnp.pad(a, ((0, 0), (0, 0), (pad, pad)), constant_values=-jnp.inf)
        m = ap[:, :, 0:T]
        for k in range(1, K):
            m = jnp.maximum(m, ap[:, :, k:k + T])
        return m

    def inception(a, p):
        x1 = conv1x1(a, p["bneck_w"], p["bneck_b"])
        branches = [tconv(x1, p["conv_w"][i], p["conv_b"][i]) for i in range(n_convs)]
        x2 = conv1x1(maxpool(a, kernel_unit), p["pool_w"], p["pool_b"])
        return jnp.maximum(jnp.concatenate(branches + [x2], axis=1), 0.0)

    def residual(a, p):
        return jnp.maximum(conv1x1(a, p["w"], p["b"]), 0.0)

    mods = rp["inception"]
    res1 = residual(x, rp["res1"])
    out = inception(x, mods[0])
    out = inception(out, mods[1])
    out = inception(out, mods[2])
    out = out + res1
    res2 = residual(out, rp["res2"])
    out = inception(out, mods[3])
    out = inception(out, mods[4])
    out = inception(out, mods[5])
    out = res2 + out
    pooled = jnp.mean(out, axis=2)                               # (B, C)
    logits = jnp.dot(pooled, rp["fc_wT"], precision=hi) + rp["fc_b"]
    z = logits - jnp.max(logits, axis=1, keepdims=True)
    return z - jnp.log(jnp.sum(jnp.exp(z), axis=1, keepdims=True))


# --------------------------------------------------------------------------
# Main
# --------------------------------------------------------------------------

if __name__ == "__main__":
    # Small configuration consistent with the module's constructor math:
    #   sfreq=50, kernel_unit_s=0.1 -> kernel_unit = 5 (odd, symmetric 'same')
    #   input_window_s=0.32         -> T = 16
    #   n_convs=2, n_filters=8      -> intermediate channels = 24
    # B=16 so lane packing (8 samples/step -> 128 lanes) still leaves 2 grid
    # steps for a second v7x TensorCore.
    B, in_channels, n_classes = 16, 4, 3
    sfreq, kernel_unit_s = 50, 0.1
    kernel_unit = int(kernel_unit_s * sfreq)        # 5
    T = int(0.32 * sfreq)                           # 16
    n_convs, n_filters = 2, 8

    key = jax.random.PRNGKey(0)
    k_x, k_p = jax.random.split(key)
    x = jax.random.normal(k_x, (B, in_channels, T), jnp.float32)
    kp, rp = make_params(k_p, in_channels, n_classes, n_convs, n_filters,
                         kernel_unit)

    fwd = jax.jit(functools.partial(eeg_inception_mi_forward,
                                    kernel_unit=kernel_unit, n_convs=n_convs,
                                    n_filters=n_filters))
    out = jax.block_until_ready(fwd(x, kp))

    assert out.shape == (B, n_classes)
    assert bool(jnp.all(jnp.isfinite(out)))
    # rows of log-softmax must exp-sum to 1
    assert bool(jnp.allclose(jnp.sum(jnp.exp(out), axis=1), 1.0, atol=1e-4))

    # compare against the un-fused pure-JAX f32 reference; tolerance slightly
    # relaxed because MXU operands are bf16 (accumulation stays f32).
    ref = reference_forward(x, rp, kernel_unit=kernel_unit, n_convs=n_convs)
    assert bool(jnp.allclose(out, ref, atol=2e-2, rtol=2e-2))

    print("KERNEL_OK")
</pallas_src>

<mosaic_0001>
module attributes {stable_mosaic.version = 11 : i64} {
  func.func @_eeg_inception_mi_kernel(%arg0: i32, %arg1: memref<1x4x128xf32, #tpu.memory_space<vmem>>, %arg2: memref<120x128xf32, #tpu.memory_space<vmem>>, %arg3: memref<5x128xf32, #tpu.memory_space<vmem>>, %arg4: memref<128x8xbf16, #tpu.memory_space<vmem>>, %arg5: memref<32x4xbf16, #tpu.memory_space<vmem>>, %arg6: memref<32x1xf32, #tpu.memory_space<vmem>>, %arg7: memref<24x124xbf16, #tpu.memory_space<vmem>>, %arg8: memref<24x1xf32, #tpu.memory_space<vmem>>, %arg9: memref<4x8x24xbf16, #tpu.memory_space<vmem>>, %arg10: memref<4x8x1xf32, #tpu.memory_space<vmem>>, %arg11: memref<5x24x144xbf16, #tpu.memory_space<vmem>>, %arg12: memref<5x24x1xf32, #tpu.memory_space<vmem>>, %arg13: memref<32x24xbf16, #tpu.memory_space<vmem>>, %arg14: memref<32x1xf32, #tpu.memory_space<vmem>>, %arg15: memref<3x24xbf16, #tpu.memory_space<vmem>>, %arg16: memref<3x1xf32, #tpu.memory_space<vmem>>, %arg17: memref<1x3x8xf32, #tpu.memory_space<vmem>>) attributes {dimension_semantics = [#tpu.dimension_semantics<parallel>], iteration_bounds = array<i64: 2>, scalar_prefetch = 0 : i64, scratch_operands = 0 : i64, tpu.core_type = #tpu.core_type<tc>, window_params = [{transform_indices = @transform_0, window_bounds = array<i64: 1, 4, 128>}, {pipeline_mode = #tpu.pipeline_mode<synchronous>, transform_indices = @transform_1, window_bounds = array<i64: 120, 128>}, {pipeline_mode = #tpu.pipeline_mode<synchronous>, transform_indices = @transform_2, window_bounds = array<i64: 5, 128>}, {pipeline_mode = #tpu.pipeline_mode<synchronous>, transform_indices = @transform_3, window_bounds = array<i64: 128, 8>}, {pipeline_mode = #tpu.pipeline_mode<synchronous>, transform_indices = @transform_4, window_bounds = array<i64: 32, 4>}, {pipeline_mode = #tpu.pipeline_mode<synchronous>, transform_indices = @transform_5, window_bounds = array<i64: 32, 1>}, {pipeline_mode = #tpu.pipeline_mode<synchronous>, transform_indices = @transform_6, window_bounds = array<i64: 24, 124>}, {pipeline_mode = #tpu.pipeline_mode<synchronous>, transform_indices = @transform_7, window_bounds = array<i64: 24, 1>}, {pipeline_mode = #tpu.pipeline_mode<synchronous>, transform_indices = @transform_8, window_bounds = array<i64: 4, 8, 24>}, {pipeline_mode = #tpu.pipeline_mode<synchronous>, transform_indices = @transform_9, window_bounds = array<i64: 4, 8, 1>}, {pipeline_mode = #tpu.pipeline_mode<synchronous>, transform_indices = @transform_10, window_bounds = array<i64: 5, 24, 144>}, {pipeline_mode = #tpu.pipeline_mode<synchronous>, transform_indices = @transform_11, window_bounds = array<i64: 5, 24, 1>}, {pipeline_mode = #tpu.pipeline_mode<synchronous>, transform_indices = @transform_12, window_bounds = array<i64: 32, 24>}, {pipeline_mode = #tpu.pipeline_mode<synchronous>, transform_indices = @transform_13, window_bounds = array<i64: 32, 1>}, {pipeline_mode = #tpu.pipeline_mode<synchronous>, transform_indices = @transform_14, window_bounds = array<i64: 3, 24>}, {pipeline_mode = #tpu.pipeline_mode<synchronous>, transform_indices = @transform_15, window_bounds = array<i64: 3, 1>}, {transform_indices = @transform_16, window_bounds = array<i64: 1, 3, 8>}]} {
    %c0 = arith.constant 0 : index
    %c0_0 = arith.constant 0 : index
    %0 = vector.load %arg2[%c0, %c0_0] : memref<120x128xf32, #tpu.memory_space<vmem>>, vector<120x128xf32>
    %c0_1 = arith.constant 0 : index
    %c0_2 = arith.constant 0 : index
    %1 = vector.load %arg3[%c0_1, %c0_2] : memref<5x128xf32, #tpu.memory_space<vmem>>, vector<5x128xf32>
    %c0_3 = arith.constant 0 : index
    %c0_4 = arith.constant 0 : index
    %c0_5 = arith.constant 0 : index
    %2 = vector.load %arg1[%c0_3, %c0_4, %c0_5] : memref<1x4x128xf32, #tpu.memory_space<vmem>>, vector<1x4x128xf32>
    %3 = vector.shape_cast %2 : vector<1x4x128xf32> to vector<4x128xf32>
    %c0_6 = arith.constant 0 : index
    %c0_7 = arith.constant 0 : index
    %4 = vector.load %arg5[%c0_6, %c0_7] : memref<32x4xbf16, #tpu.memory_space<vmem>>, vector<32x4xbf16>
    %5 = arith.truncf %3 : vector<4x128xf32> to vector<4x128xbf16>
    %cst = arith.constant dense<0.000000e+00> : vector<32x128xf32>
    %6 = tpu.matmul %4, %5, %cst {dimension_numbers = #tpu.dot_dimension_numbers<[1], [0], [0], [1], [0, 0, 1, 1], [], []>} : vector<32x4xbf16>, vector<4x128xbf16>, vector<32x128xf32> -> vector<32x128xf32>
    %c0_8 = arith.constant 0 : index
    %c0_9 = arith.constant 0 : index
    %7 = vector.load %arg6[%c0_8, %c0_9] : memref<32x1xf32, #tpu.memory_space<vmem>>, vector<32x1xf32>
    %8 = vector.broadcast %7 : vector<32x1xf32> to vector<32x128xf32>
    %9 = arith.addf %6, %8 : vector<32x128xf32>
    %10 = vector.extract_strided_slice %9 {offsets = [0, 0], sizes = [24, 128], strides = [1, 1]} : vector<32x128xf32> to vector<24x128xf32>
    %cst_10 = arith.constant 0.000000e+00 : f32
    %11 = vector.broadcast %cst_10 : f32 to vector<24x128xf32>
    %12 = arith.maximumf %10, %11 : vector<24x128xf32>
    %13 = vector.extract_strided_slice %9 {offsets = [24, 0], sizes = [8, 128], strides = [1, 1]} : vector<32x128xf32> to vector<8x128xf32>
    %c0_11 = arith.constant 0 : index
    %c0_12 = arith.constant 0 : index
    %14 = vector.load %arg7[%c0_11, %c0_12] : memref<24x124xbf16, #tpu.memory_space<vmem>>, vector<24x124xbf16>
    %c0_13 = arith.constant 0 : index
    %c0_14 = arith.constant 0 : index
    %15 = vector.load %arg8[%c0_13, %c0_14] : memref<24x1xf32, #tpu.memory_space<vmem>>, vector<24x1xf32>
    %c7_i32 = arith.constant 7 : i32
    %16 = tpu.dynamic_rotate %13 by %c7_i32 dim 1 : vector<8x128xf32>, i32 -> vector<8x128xf32>
    %c6_i32 = arith.constant 6 : i32
    %17 = tpu.dynamic_rotate %13 by %c6_i32 dim 1 : vector<8x128xf32>, i32 -> vector<8x128xf32>
    %c5_i32 = arith.constant 5 : i32
    %18 = tpu.dynamic_rotate %13 by %c5_i32 dim 1 : vector<8x128xf32>, i32 -> vector<8x128xf32>
    %c4_i32 = arith.constant 4 : i32
    %19 = tpu.dynamic_rotate %13 by %c4_i32 dim 1 : vector<8x128xf32>, i32 -> vector<8x128xf32>
    %c3_i32 = arith.constant 3 : i32
    %20 = tpu.dynamic_rotate %13 by %c3_i32 dim 1 : vector<8x128xf32>, i32 -> vector<8x128xf32>
    %c2_i32 = arith.constant 2 : i32
    %21 = tpu.dynamic_rotate %13 by %c2_i32 dim 1 : vector<8x128xf32>, i32 -> vector<8x128xf32>
    %c1_i32 = arith.constant 1 : i32
    %22 = tpu.dynamic_rotate %13 by %c1_i32 dim 1 : vector<8x128xf32>, i32 -> vector<8x128xf32>
    %c127_i32 = arith.constant 127 : i32
    %23 = tpu.dynamic_rotate %13 by %c127_i32 dim 1 : vector<8x128xf32>, i32 -> vector<8x128xf32>
    %c126_i32 = arith.constant 126 : i32
    %24 = tpu.dynamic_rotate %13 by %c126_i32 dim 1 : vector<8x128xf32>, i32 -> vector<8x128xf32>
    %c125_i32 = arith.constant 125 : i32
    %25 = tpu.dynamic_rotate %13 by %c125_i32 dim 1 : vector<8x128xf32>, i32 -> vector<8x128xf32>
    %c124_i32 = arith.constant 124 : i32
    %26 = tpu.dynamic_rotate %13 by %c124_i32 dim 1 : vector<8x128xf32>, i32 -> vector<8x128xf32>
    %c123_i32 = arith.constant 123 : i32
    %27 = tpu.dynamic_rotate %13 by %c123_i32 dim 1 : vector<8x128xf32>, i32 -> vector<8x128xf32>
    %c122_i32 = arith.constant 122 : i32
    %28 = tpu.dynamic_rotate %13 by %c122_i32 dim 1 : vector<8x128xf32>, i32 -> vector<8x128xf32>
    %c121_i32 = arith.constant 121 : i32
    %29 = tpu.dynamic_rotate %13 by %c121_i32 dim 1 : vector<8x128xf32>, i32 -> vector<8x128xf32>
    %30 = tpu.concatenate %16, %17, %18, %19, %20, %21, %22, %13, %23, %24, %25, %26, %27, %28, %29 in 0 : vector<8x128xf32>, vector<8x128xf32>, vector<8x128xf32>, vector<8x128xf32>, vector<8x128xf32>, vector<8x128xf32>, vector<8x128xf32>, vector<8x128xf32>, vector<8x128xf32>, vector<8x128xf32>, vector<8x128xf32>, vector<8x128xf32>, vector<8x128xf32>, vector<8x128xf32>, vector<8x128xf32> -> vector<120x128xf32>
    %31 = arith.mulf %30, %0 : vector<120x128xf32>
    %c2_i32_15 = arith.constant 2 : i32
    %32 = tpu.dynamic_rotate %3 by %c2_i32_15 dim 1 : vector<4x128xf32>, i32 -> vector<4x128xf32>
    %33 = vector.extract_strided_slice %1 {offsets = [0, 0], sizes = [1, 128], strides = [1, 1]} : vector<5x128xf32> to vector<1x128xf32>
    %34 = vector.broadcast %33 : vector<1x128xf32> to vector<4x128xf32>
    %35 = arith.addf %32, %34 : vector<4x128xf32>
    %36 = arith.maximumf %3, %35 : vector<4x128xf32>
    %c1_i32_16 = arith.constant 1 : i32
    %37 = tpu.dynamic_rotate %3 by %c1_i32_16 dim 1 : vector<4x128xf32>, i32 -> vector<4x128xf32>
    %38 = vector.extract_strided_slice %1 {offsets = [1, 0], sizes = [1, 128], strides = [1, 1]} : vector<5x128xf32> to vector<1x128xf32>
    %39 = vector.broadcast %38 : vector<1x128xf32> to vector<4x128xf32>
    %40 = arith.addf %37, %39 : vector<4x128xf32>
    %41 = arith.maximumf %36, %40 : vector<4x128xf32>
    %c127_i32_17 = arith.constant 127 : i32
    %42 = tpu.dynamic_rotate %3 by %c127_i32_17 dim 1 : vector<4x128xf32>, i32 -> vector<4x128xf32>
    %43 = vector.extract_strided_slice %1 {offsets = [3, 0], sizes = [1, 128], strides = [1, 1]} : vector<5x128xf32> to vector<1x128xf32>
    %44 = vector.broadcast %43 : vector<1x128xf32> to vector<4x128xf32>
    %45 = arith.addf %42, %44 : vector<4x128xf32>
    %46 = arith.maximumf %41, %45 : vector<4x128xf32>
    %c126_i32_18 = arith.constant 126 : i32
    %47 = tpu.dynamic_rotate %3 by %c126_i32_18 dim 1 : vector<4x128xf32>, i32 -> vector<4x128xf32>
    %48 = vector.extract_strided_slice %1 {offsets = [4, 0], sizes = [1, 128], strides = [1, 1]} : vector<5x128xf32> to vector<1x128xf32>
    %49 = vector.broadcast %48 : vector<1x128xf32> to vector<4x128xf32>
    %50 = arith.addf %47, %49 : vector<4x128xf32>
    %51 = arith.maximumf %46, %50 : vector<4x128xf32>
    %52 = tpu.concatenate %31, %51 in 0 : vector<120x128xf32>, vector<4x128xf32> -> vector<124x128xf32>
    %53 = arith.truncf %52 : vector<124x128xf32> to vector<124x128xbf16>
    %cst_19 = arith.constant dense<0.000000e+00> : vector<24x128xf32>
    %54 = tpu.matmul %14, %53, %cst_19 {dimension_numbers = #tpu.dot_dimension_numbers<[1], [0], [0], [1], [0, 0, 1, 1], [], []>} : vector<24x124xbf16>, vector<124x128xbf16>, vector<24x128xf32> -> vector<24x128xf32>
    %55 = vector.broadcast %15 : vector<24x1xf32> to vector<24x128xf32>
    %56 = arith.addf %54, %55 : vector<24x128xf32>
    %cst_20 = arith.constant 0.000000e+00 : f32
    %57 = vector.broadcast %cst_20 : f32 to vector<24x128xf32>
    %58 = arith.maximumf %56, %57 : vector<24x128xf32>
    %c0_21 = arith.constant 0 : index
    %c0_22 = arith.constant 0 : index
    %c0_23 = arith.constant 0 : index
    %59 = vector.load %arg9[%c0_21, %c0_22, %c0_23] : memref<4x8x24xbf16, #tpu.memory_space<vmem>>, vector<1x8x24xbf16>
    %60 = vector.shape_cast %59 : vector<1x8x24xbf16> to vector<8x24xbf16>
    %61 = arith.truncf %58 : vector<24x128xf32> to vector<24x128xbf16>
    %cst_24 = arith.constant dense<0.000000e+00> : vector<8x128xf32>
    %62 = tpu.matmul %60, %61, %cst_24 {dimension_numbers = #tpu.dot_dimension_numbers<[1], [0], [0], [1], [0, 0, 1, 1], [], []>} : vector<8x24xbf16>, vector<24x128xbf16>, vector<8x128xf32> -> vector<8x128xf32>
    %c0_25 = arith.constant 0 : index
    %c0_26 = arith.constant 0 : index
    %c0_27 = arith.constant 0 : index
    %63 = vector.load %arg10[%c0_25, %c0_26, %c0_27] : memref<4x8x1xf32, #tpu.memory_space<vmem>>, vector<1x8x1xf32>
    %64 = vector.shape_cast %63 : vector<1x8x1xf32> to vector<8x1xf32>
    %65 = vector.broadcast %64 : vector<8x1xf32> to vector<8x128xf32>
    %66 = arith.addf %62, %65 : vector<8x128xf32>
    %c0_28 = arith.constant 0 : index
    %c0_29 = arith.constant 0 : index
    %c0_30 = arith.constant 0 : index
    %67 = vector.load %arg11[%c0_28, %c0_29, %c0_30] : memref<5x24x144xbf16, #tpu.memory_space<vmem>>, vector<1x24x144xbf16>
    %68 = vector.shape_cast %67 : vector<1x24x144xbf16> to vector<24x144xbf16>
    %c0_31 = arith.constant 0 : index
    %c0_32 = arith.constant 0 : index
    %c0_33 = arith.constant 0 : index
    %69 = vector.load %arg12[%c0_31, %c0_32, %c0_33] : memref<5x24x1xf32, #tpu.memory_space<vmem>>, vector<1x24x1xf32>
    %70 = vector.shape_cast %69 : vector<1x24x1xf32> to vector<24x1xf32>
    %c7_i32_34 = arith.constant 7 : i32
    %71 = tpu.dynamic_rotate %66 by %c7_i32_34 dim 1 : vector<8x128xf32>, i32 -> vector<8x128xf32>
    %c6_i32_35 = arith.constant 6 : i32
    %72 = tpu.dynamic_rotate %66 by %c6_i32_35 dim 1 : vector<8x128xf32>, i32 -> vector<8x128xf32>
    %c5_i32_36 = arith.constant 5 : i32
    %73 = tpu.dynamic_rotate %66 by %c5_i32_36 dim 1 : vector<8x128xf32>, i32 -> vector<8x128xf32>
    %c4_i32_37 = arith.constant 4 : i32
    %74 = tpu.dynamic_rotate %66 by %c4_i32_37 dim 1 : vector<8x128xf32>, i32 -> vector<8x128xf32>
    %c3_i32_38 = arith.constant 3 : i32
    %75 = tpu.dynamic_rotate %66 by %c3_i32_38 dim 1 : vector<8x128xf32>, i32 -> vector<8x128xf32>
    %c2_i32_39 = arith.constant 2 : i32
    %76 = tpu.dynamic_rotate %66 by %c2_i32_39 dim 1 : vector<8x128xf32>, i32 -> vector<8x128xf32>
    %c1_i32_40 = arith.constant 1 : i32
    %77 = tpu.dynamic_rotate %66 by %c1_i32_40 dim 1 : vector<8x128xf32>, i32 -> vector<8x128xf32>
    %c127_i32_41 = arith.constant 127 : i32
    %78 = tpu.dynamic_rotate %66 by %c127_i32_41 dim 1 : vector<8x128xf32>, i32 -> vector<8x128xf32>
    %c126_i32_42 = arith.constant 126 : i32
    %79 = tpu.dynamic_rotate %66 by %c126_i32_42 dim 1 : vector<8x128xf32>, i32 -> vector<8x128xf32>
    %c125_i32_43 = arith.constant 125 : i32
    %80 = tpu.dynamic_rotate %66 by %c125_i32_43 dim 1 : vector<8x128xf32>, i32 -> vector<8x128xf32>
    %c124_i32_44 = arith.constant 124 : i32
    %81 = tpu.dynamic_rotate %66 by %c124_i32_44 dim 1 : vector<8x128xf32>, i32 -> vector<8x128xf32>
    %c123_i32_45 = arith.constant 123 : i32
    %82 = tpu.dynamic_rotate %66 by %c123_i32_45 dim 1 : vector<8x128xf32>, i32 -> vector<8x128xf32>
    %c122_i32_46 = arith.constant 122 : i32
    %83 = tpu.dynamic_rotate %66 by %c122_i32_46 dim 1 : vector<8x128xf32>, i32 -> vector<8x128xf32>
    %c121_i32_47 = arith.constant 121 : i32
    %84 = tpu.dynamic_rotate %66 by %c121_i32_47 dim 1 : vector<8x128xf32>, i32 -> vector<8x128xf32>
    %85 = tpu.concatenate %71, %72, %73, %74, %75, %76, %77, %66, %78, %79, %80, %81, %82, %83, %84 in 0 : vector<8x128xf32>, vector<8x128xf32>, vector<8x128xf32>, vector<8x128xf32>, vector<8x128xf32>, vector<8x128xf32>, vector<8x128xf32>, vector<8x128xf32>, vector<8x128xf32>, vector<8x128xf32>, vector<8x128xf32>, vector<8x128xf32>, vector<8x128xf32>, vector<8x128xf32>, vector<8x128xf32> -> vector<120x128xf32>
    %86 = arith.mulf %85, %0 : vector<120x128xf32>
    %c2_i32_48 = arith.constant 2 : i32
    %87 = tpu.dynamic_rotate %58 by %c2_i32_48 dim 1 : vector<24x128xf32>, i32 -> vector<24x128xf32>
    %88 = vector.extract_strided_slice %1 {offsets = [0, 0], sizes = [1, 128], strides = [1, 1]} : vector<5x128xf32> to vector<1x128xf32>
    %89 = vector.broadcast %88 : vector<1x128xf32> to vector<24x128xf32>
    %90 = arith.addf %87, %89 : vector<24x128xf32>
    %91 = arith.maximumf %58, %90 : vector<24x128xf32>
    %c1_i32_49 = arith.constant 1 : i32
    %92 = tpu.dynamic_rotate %58 by %c1_i32_49 dim 1 : vector<24x128xf32>, i32 -> vector<24x128xf32>
    %93 = vector.extract_strided_slice %1 {offsets = [1, 0], sizes = [1, 128], strides = [1, 1]} : vector<5x128xf32> to vector<1x128xf32>
    %94 = vector.broadcast %93 : vector<1x128xf32> to vector<24x128xf32>
    %95 = arith.addf %92, %94 : vector<24x128xf32>
    %96 = arith.maximumf %91, %95 : vector<24x128xf32>
    %c127_i32_50 = arith.constant 127 : i32
    %97 = tpu.dynamic_rotate %58 by %c127_i32_50 dim 1 : vector<24x128xf32>, i32 -> vector<24x128xf32>
    %98 = vector.extract_strided_slice %1 {offsets = [3, 0], sizes = [1, 128], strides = [1, 1]} : vector<5x128xf32> to vector<1x128xf32>
    %99 = vector.broadcast %98 : vector<1x128xf32> to vector<24x128xf32>
    %100 = arith.addf %97, %99 : vector<24x128xf32>
    %101 = arith.maximumf %96, %100 : vector<24x128xf32>
    %c126_i32_51 = arith.constant 126 : i32
    %102 = tpu.dynamic_rotate %58 by %c126_i32_51 dim 1 : vector<24x128xf32>, i32 -> vector<24x128xf32>
    %103 = vector.extract_strided_slice %1 {offsets = [4, 0], sizes = [1, 128], strides = [1, 1]} : vector<5x128xf32> to vector<1x128xf32>
    %104 = vector.broadcast %103 : vector<1x128xf32> to vector<24x128xf32>
    %105 = arith.addf %102, %104 : vector<24x128xf32>
    %106 = arith.maximumf %101, %105 : vector<24x128xf32>
    %107 = tpu.concatenate %86, %106 in 0 : vector<120x128xf32>, vector<24x128xf32> -> vector<144x128xf32>
    %108 = arith.truncf %107 : vector<144x128xf32> to vector<144x128xbf16>
    %cst_52 = arith.constant dense<0.000000e+00> : vector<24x128xf32>
    %109 = tpu.matmul %68, %108, %cst_52 {dimension_numbers = #tpu.dot_dimension_numbers<[1], [0], [0], [1], [0, 0, 1, 1], [], []>} : vector<24x144xbf16>, vector<144x128xbf16>, vector<24x128xf32> -> vector<24x128xf32>
    %110 = vector.broadcast %70 : vector<24x1xf32> to vector<24x128xf32>
    %111 = arith.addf %109, %110 : vector<24x128xf32>
    %cst_53 = arith.constant 0.000000e+00 : f32
    %112 = vector.broadcast %cst_53 : f32 to vector<24x128xf32>
    %113 = arith.maximumf %111, %112 : vector<24x128xf32>
    %c1 = arith.constant 1 : index
    %c0_54 = arith.constant 0 : index
    %c0_55 = arith.constant 0 : index
    %114 = vector.load %arg9[%c1, %c0_54, %c0_55] : memref<4x8x24xbf16, #tpu.memory_space<vmem>>, vector<1x8x24xbf16>
    %115 = vector.shape_cast %114 : vector<1x8x24xbf16> to vector<8x24xbf16>
    %116 = arith.truncf %113 : vector<24x128xf32> to vector<24x128xbf16>
    %cst_56 = arith.constant dense<0.000000e+00> : vector<8x128xf32>
    %117 = tpu.matmul %115, %116, %cst_56 {dimension_numbers = #tpu.dot_dimension_numbers<[1], [0], [0], [1], [0, 0, 1, 1], [], []>} : vector<8x24xbf16>, vector<24x128xbf16>, vector<8x128xf32> -> vector<8x128xf32>
    %c1_57 = arith.constant 1 : index
    %c0_58 = arith.constant 0 : index
    %c0_59 = arith.constant 0 : index
    %118 = vector.load %arg10[%c1_57, %c0_58, %c0_59] : memref<4x8x1xf32, #tpu.memory_space<vmem>>, vector<1x8x1xf32>
    %119 = vector.shape_cast %118 : vector<1x8x1xf32> to vector<8x1xf32>
    %120 = vector.broadcast %119 : vector<8x1xf32> to vector<8x128xf32>
    %121 = arith.addf %117, %120 : vector<8x128xf32>
    %c1_60 = arith.constant 1 : index
    %c0_61 = arith.constant 0 : index
    %c0_62 = arith.constant 0 : index
    %122 = vector.load %arg11[%c1_60, %c0_61, %c0_62] : memref<5x24x144xbf16, #tpu.memory_space<vmem>>, vector<1x24x144xbf16>
    %123 = vector.shape_cast %122 : vector<1x24x144xbf16> to vector<24x144xbf16>
    %c1_63 = arith.constant 1 : index
    %c0_64 = arith.constant 0 : index
    %c0_65 = arith.constant 0 : index
    %124 = vector.load %arg12[%c1_63, %c0_64, %c0_65] : memref<5x24x1xf32, #tpu.memory_space<vmem>>, vector<1x24x1xf32>
    %125 = vector.shape_cast %124 : vector<1x24x1xf32> to vector<24x1xf32>
    %c7_i32_66 = arith.constant 7 : i32
    %126 = tpu.dynamic_rotate %121 by %c7_i32_66 dim 1 : vector<8x128xf32>, i32 -> vector<8x128xf32>
    %c6_i32_67 = arith.constant 6 : i32
    %127 = tpu.dynamic_rotate %121 by %c6_i32_67 dim 1 : vector<8x128xf32>, i32 -> vector<8x128xf32>
    %c5_i32_68 = arith.constant 5 : i32
    %128 = tpu.dynamic_rotate %121 by %c5_i32_68 dim 1 : vector<8x128xf32>, i32 -> vector<8x128xf32>
    %c4_i32_69 = arith.constant 4 : i32
    %129 = tpu.dynamic_rotate %121 by %c4_i32_69 dim 1 : vector<8x128xf32>, i32 -> vector<8x128xf32>
    %c3_i32_70 = arith.constant 3 : i32
    %130 = tpu.dynamic_rotate %121 by %c3_i32_70 dim 1 : vector<8x128xf32>, i32 -> vector<8x128xf32>
    %c2_i32_71 = arith.constant 2 : i32
    %131 = tpu.dynamic_rotate %121 by %c2_i32_71 dim 1 : vector<8x128xf32>, i32 -> vector<8x128xf32>
    %c1_i32_72 = arith.constant 1 : i32
    %132 = tpu.dynamic_rotate %121 by %c1_i32_72 dim 1 : vector<8x128xf32>, i32 -> vector<8x128xf32>
    %c127_i32_73 = arith.constant 127 : i32
    %133 = tpu.dynamic_rotate %121 by %c127_i32_73 dim 1 : vector<8x128xf32>, i32 -> vector<8x128xf32>
    %c126_i32_74 = arith.constant 126 : i32
    %134 = tpu.dynamic_rotate %121 by %c126_i32_74 dim 1 : vector<8x128xf32>, i32 -> vector<8x128xf32>
    %c125_i32_75 = arith.constant 125 : i32
    %135 = tpu.dynamic_rotate %121 by %c125_i32_75 dim 1 : vector<8x128xf32>, i32 -> vector<8x128xf32>
    %c124_i32_76 = arith.constant 124 : i32
    %136 = tpu.dynamic_rotate %121 by %c124_i32_76 dim 1 : vector<8x128xf32>, i32 -> vector<8x128xf32>
    %c123_i32_77 = arith.constant 123 : i32
    %137 = tpu.dynamic_rotate %121 by %c123_i32_77 dim 1 : vector<8x128xf32>, i32 -> vector<8x128xf32>
    %c122_i32_78 = arith.constant 122 : i32
    %138 = tpu.dynamic_rotate %121 by %c122_i32_78 dim 1 : vector<8x128xf32>, i32 -> vector<8x128xf32>
    %c121_i32_79 = arith.constant 121 : i32
    %139 = tpu.dynamic_rotate %121 by %c121_i32_79 dim 1 : vector<8x128xf32>, i32 -> vector<8x128xf32>
    %140 = tpu.concatenate %126, %127, %128, %129, %130, %131, %132, %121, %133, %134, %135, %136, %137, %138, %139 in 0 : vector<8x128xf32>, vector<8x128xf32>, vector<8x128xf32>, vector<8x128xf32>, vector<8x128xf32>, vector<8x128xf32>, vector<8x128xf32>, vector<8x128xf32>, vector<8x128xf32>, vector<8x128xf32>, vector<8x128xf32>, vector<8x128xf32>, vector<8x128xf32>, vector<8x128xf32>, vector<8x128xf32> -> vector<120x128xf32>
    %141 = arith.mulf %140, %0 : vector<120x128xf32>
    %c2_i32_80 = arith.constant 2 : i32
    %142 = tpu.dynamic_rotate %113 by %c2_i32_80 dim 1 : vector<24x128xf32>, i32 -> vector<24x128xf32>
    %143 = vector.extract_strided_slice %1 {offsets = [0, 0], sizes = [1, 128], strides = [1, 1]} : vector<5x128xf32> to vector<1x128xf32>
    %144 = vector.broadcast %143 : vector<1x128xf32> to vector<24x128xf32>
    %145 = arith.addf %142, %144 : vector<24x128xf32>
    %146 = arith.maximumf %113, %145 : vector<24x128xf32>
    %c1_i32_81 = arith.constant 1 : i32
    %147 = tpu.dynamic_rotate %113 by %c1_i32_81 dim 1 : vector<24x128xf32>, i32 -> vector<24x128xf32>
    %148 = vector.extract_strided_slice %1 {offsets = [1, 0], sizes = [1, 128], strides = [1, 1]} : vector<5x128xf32> to vector<1x128xf32>
    %149 = vector.broadcast %148 : vector<1x128xf32> to vector<24x128xf32>
    %150 = arith.addf %147, %149 : vector<24x128xf32>
    %151 = arith.maximumf %146, %150 : vector<24x128xf32>
    %c127_i32_82 = arith.constant 127 : i32
    %152 = tpu.dynamic_rotate %113 by %c127_i32_82 dim 1 : vector<24x128xf32>, i32 -> vector<24x128xf32>
    %153 = vector.extract_strided_slice %1 {offsets = [3, 0], sizes = [1, 128], strides = [1, 1]} : vector<5x128xf32> to vector<1x128xf32>
    %154 = vector.broadcast %153 : vector<1x128xf32> to vector<24x128xf32>
    %155 = arith.addf %152, %154 : vector<24x128xf32>
    %156 = arith.maximumf %151, %155 : vector<24x128xf32>
    %c126_i32_83 = arith.constant 126 : i32
    %157 = tpu.dynamic_rotate %113 by %c126_i32_83 dim 1 : vector<24x128xf32>, i32 -> vector<24x128xf32>
    %158 = vector.extract_strided_slice %1 {offsets = [4, 0], sizes = [1, 128], strides = [1, 1]} : vector<5x128xf32> to vector<1x128xf32>
    %159 = vector.broadcast %158 : vector<1x128xf32> to vector<24x128xf32>
    %160 = arith.addf %157, %159 : vector<24x128xf32>
    %161 = arith.maximumf %156, %160 : vector<24x128xf32>
    %162 = tpu.concatenate %141, %161 in 0 : vector<120x128xf32>, vector<24x128xf32> -> vector<144x128xf32>
    %163 = arith.truncf %162 : vector<144x128xf32> to vector<144x128xbf16>
    %cst_84 = arith.constant dense<0.000000e+00> : vector<24x128xf32>
    %164 = tpu.matmul %123, %163, %cst_84 {dimension_numbers = #tpu.dot_dimension_numbers<[1], [0], [0], [1], [0, 0, 1, 1], [], []>} : vector<24x144xbf16>, vector<144x128xbf16>, vector<24x128xf32> -> vector<24x128xf32>
    %165 = vector.broadcast %125 : vector<24x1xf32> to vector<24x128xf32>
    %166 = arith.addf %164, %165 : vector<24x128xf32>
    %cst_85 = arith.constant 0.000000e+00 : f32
    %167 = vector.broadcast %cst_85 : f32 to vector<24x128xf32>
    %168 = arith.maximumf %166, %167 : vector<24x128xf32>
    %169 = arith.addf %168, %12 : vector<24x128xf32>
    %c0_86 = arith.constant 0 : index
    %c0_87 = arith.constant 0 : index
    %170 = vector.load %arg13[%c0_86, %c0_87] : memref<32x24xbf16, #tpu.memory_space<vmem>>, vector<32x24xbf16>
    %171 = arith.truncf %169 : vector<24x128xf32> to vector<24x128xbf16>
    %cst_88 = arith.constant dense<0.000000e+00> : vector<32x128xf32>
    %172 = tpu.matmul %170, %171, %cst_88 {dimension_numbers = #tpu.dot_dimension_numbers<[1], [0], [0], [1], [0, 0, 1, 1], [], []>} : vector<32x24xbf16>, vector<24x128xbf16>, vector<32x128xf32> -> vector<32x128xf32>
    %c0_89 = arith.constant 0 : index
    %c0_90 = arith.constant 0 : index
    %173 = vector.load %arg14[%c0_89, %c0_90] : memref<32x1xf32, #tpu.memory_space<vmem>>, vector<32x1xf32>
    %174 = vector.broadcast %173 : vector<32x1xf32> to vector<32x128xf32>
    %175 = arith.addf %172, %174 : vector<32x128xf32>
    %176 = vector.extract_strided_slice %175 {offsets = [0, 0], sizes = [24, 128], strides = [1, 1]} : vector<32x128xf32> to vector<24x128xf32>
    %cst_91 = arith.constant 0.000000e+00 : f32
    %177 = vector.broadcast %cst_91 : f32 to vector<24x128xf32>
    %178 = arith.maximumf %176, %177 : vector<24x128xf32>
    %179 = vector.extract_strided_slice %175 {offsets = [24, 0], sizes = [8, 128], strides = [1, 1]} : vector<32x128xf32> to vector<8x128xf32>
    %c2 = arith.constant 2 : index
    %c0_92 = arith.constant 0 : index
    %c0_93 = arith.constant 0 : index
    %180 = vector.load %arg11[%c2, %c0_92, %c0_93] : memref<5x24x144xbf16, #tpu.memory_space<vmem>>, vector<1x24x144xbf16>
    %181 = vector.shape_cast %180 : vector<1x24x144xbf16> to vector<24x144xbf16>
    %c2_94 = arith.constant 2 : index
    %c0_95 = arith.constant 0 : index
    %c0_96 = arith.constant 0 : index
    %182 = vector.load %arg12[%c2_94, %c0_95, %c0_96] : memref<5x24x1xf32, #tpu.memory_space<vmem>>, vector<1x24x1xf32>
    %183 = vector.shape_cast %182 : vector<1x24x1xf32> to vector<24x1xf32>
    %c7_i32_97 = arith.constant 7 : i32
    %184 = tpu.dynamic_rotate %179 by %c7_i32_97 dim 1 : vector<8x128xf32>, i32 -> vector<8x128xf32>
    %c6_i32_98 = arith.constant 6 : i32
    %185 = tpu.dynamic_rotate %179 by %c6_i32_98 dim 1 : vector<8x128xf32>, i32 -> vector<8x128xf32>
    %c5_i32_99 = arith.constant 5 : i32
    %186 = tpu.dynamic_rotate %179 by %c5_i32_99 dim 1 : vector<8x128xf32>, i32 -> vector<8x128xf32>
    %c4_i32_100 = arith.constant 4 : i32
    %187 = tpu.dynamic_rotate %179 by %c4_i32_100 dim 1 : vector<8x128xf32>, i32 -> vector<8x128xf32>
    %c3_i32_101 = arith.constant 3 : i32
    %188 = tpu.dynamic_rotate %179 by %c3_i32_101 dim 1 : vector<8x128xf32>, i32 -> vector<8x128xf32>
    %c2_i32_102 = arith.constant 2 : i32
    %189 = tpu.dynamic_rotate %179 by %c2_i32_102 dim 1 : vector<8x128xf32>, i32 -> vector<8x128xf32>
    %c1_i32_103 = arith.constant 1 : i32
    %190 = tpu.dynamic_rotate %179 by %c1_i32_103 dim 1 : vector<8x128xf32>, i32 -> vector<8x128xf32>
    %c127_i32_104 = arith.constant 127 : i32
    %191 = tpu.dynamic_rotate %179 by %c127_i32_104 dim 1 : vector<8x128xf32>, i32 -> vector<8x128xf32>
    %c126_i32_105 = arith.constant 126 : i32
    %192 = tpu.dynamic_rotate %179 by %c126_i32_105 dim 1 : vector<8x128xf32>, i32 -> vector<8x128xf32>
    %c125_i32_106 = arith.constant 125 : i32
    %193 = tpu.dynamic_rotate %179 by %c125_i32_106 dim 1 : vector<8x128xf32>, i32 -> vector<8x128xf32>
    %c124_i32_107 = arith.constant 124 : i32
    %194 = tpu.dynamic_rotate %179 by %c124_i32_107 dim 1 : vector<8x128xf32>, i32 -> vector<8x128xf32>
    %c123_i32_108 = arith.constant 123 : i32
    %195 = tpu.dynamic_rotate %179 by %c123_i32_108 dim 1 : vector<8x128xf32>, i32 -> vector<8x128xf32>
    %c122_i32_109 = arith.constant 122 : i32
    %196 = tpu.dynamic_rotate %179 by %c122_i32_109 dim 1 : vector<8x128xf32>, i32 -> vector<8x128xf32>
    %c121_i32_110 = arith.constant 121 : i32
    %197 = tpu.dynamic_rotate %179 by %c121_i32_110 dim 1 : vector<8x128xf32>, i32 -> vector<8x128xf32>
    %198 = tpu.concatenate %184, %185, %186, %187, %188, %189, %190, %179, %191, %192, %193, %194, %195, %196, %197 in 0 : vector<8x128xf32>, vector<8x128xf32>, vector<8x128xf32>, vector<8x128xf32>, vector<8x128xf32>, vector<8x128xf32>, vector<8x128xf32>, vector<8x128xf32>, vector<8x128xf32>, vector<8x128xf32>, vector<8x128xf32>, vector<8x128xf32>, vector<8x128xf32>, vector<8x128xf32>, vector<8x128xf32> -> vector<120x128xf32>
    %199 = arith.mulf %198, %0 : vector<120x128xf32>
    %c2_i32_111 = arith.constant 2 : i32
    %200 = tpu.dynamic_rotate %169 by %c2_i32_111 dim 1 : vector<24x128xf32>, i32 -> vector<24x128xf32>
    %201 = vector.extract_strided_slice %1 {offsets = [0, 0], sizes = [1, 128], strides = [1, 1]} : vector<5x128xf32> to vector<1x128xf32>
    %202 = vector.broadcast %201 : vector<1x128xf32> to vector<24x128xf32>
    %203 = arith.addf %200, %202 : vector<24x128xf32>
    %204 = arith.maximumf %169, %203 : vector<24x128xf32>
    %c1_i32_112 = arith.constant 1 : i32
    %205 = tpu.dynamic_rotate %169 by %c1_i32_112 dim 1 : vector<24x128xf32>, i32 -> vector<24x128xf32>
    %206 = vector.extract_strided_slice %1 {offsets = [1, 0], sizes = [1, 128], strides = [1, 1]} : vector<5x128xf32> to vector<1x128xf32>
    %207 = vector.broadcast %206 : vector<1x128xf32> to vector<24x128xf32>
    %208 = arith.addf %205, %207 : vector<24x128xf32>
    %209 = arith.maximumf %204, %208 : vector<24x128xf32>
    %c127_i32_113 = arith.constant 127 : i32
    %210 = tpu.dynamic_rotate %169 by %c127_i32_113 dim 1 : vector<24x128xf32>, i32 -> vector<24x128xf32>
    %211 = vector.extract_strided_slice %1 {offsets = [3, 0], sizes = [1, 128], strides = [1, 1]} : vector<5x128xf32> to vector<1x128xf32>
    %212 = vector.broadcast %211 : vector<1x128xf32> to vector<24x128xf32>
    %213 = arith.addf %210, %212 : vector<24x128xf32>
    %214 = arith.maximumf %209, %213 : vector<24x128xf32>
    %c126_i32_114 = arith.constant 126 : i32
    %215 = tpu.dynamic_rotate %169 by %c126_i32_114 dim 1 : vector<24x128xf32>, i32 -> vector<24x128xf32>
    %216 = vector.extract_strided_slice %1 {offsets = [4, 0], sizes = [1, 128], strides = [1, 1]} : vector<5x128xf32> to vector<1x128xf32>
    %217 = vector.broadcast %216 : vector<1x128xf32> to vector<24x128xf32>
    %218 = arith.addf %215, %217 : vector<24x128xf32>
    %219 = arith.maximumf %214, %218 : vector<24x128xf32>
    %220 = tpu.concatenate %199, %219 in 0 : vector<120x128xf32>, vector<24x128xf32> -> vector<144x128xf32>
    %221 = arith.truncf %220 : vector<144x128xf32> to vector<144x128xbf16>
    %cst_115 = arith.constant dense<0.000000e+00> : vector<24x128xf32>
    %222 = tpu.matmul %181, %221, %cst_115 {dimension_numbers = #tpu.dot_dimension_numbers<[1], [0], [0], [1], [0, 0, 1, 1], [], []>} : vector<24x144xbf16>, vector<144x128xbf16>, vector<24x128xf32> -> vector<24x128xf32>
    %223 = vector.broadcast %183 : vector<24x1xf32> to vector<24x128xf32>
    %224 = arith.addf %222, %223 : vector<24x128xf32>
    %cst_116 = arith.constant 0.000000e+00 : f32
    %225 = vector.broadcast %cst_116 : f32 to vector<24x128xf32>
    %226 = arith.maximumf %224, %225 : vector<24x128xf32>
    %c2_117 = arith.constant 2 : index
    %c0_118 = arith.constant 0 : index
    %c0_119 = arith.constant 0 : index
    %227 = vector.load %arg9[%c2_117, %c0_118, %c0_119] : memref<4x8x24xbf16, #tpu.memory_space<vmem>>, vector<1x8x24xbf16>
    %228 = vector.shape_cast %227 : vector<1x8x24xbf16> to vector<8x24xbf16>
    %229 = arith.truncf %226 : vector<24x128xf32> to vector<24x128xbf16>
    %cst_120 = arith.constant dense<0.000000e+00> : vector<8x128xf32>
    %230 = tpu.matmul %228, %229, %cst_120 {dimension_numbers = #tpu.dot_dimension_numbers<[1], [0], [0], [1], [0, 0, 1, 1], [], []>} : vector<8x24xbf16>, vector<24x128xbf16>, vector<8x128xf32> -> vector<8x128xf32>
    %c2_121 = arith.constant 2 : index
    %c0_122 = arith.constant 0 : index
    %c0_123 = arith.constant 0 : index
    %231 = vector.load %arg10[%c2_121, %c0_122, %c0_123] : memref<4x8x1xf32, #tpu.memory_space<vmem>>, vector<1x8x1xf32>
    %232 = vector.shape_cast %231 : vector<1x8x1xf32> to vector<8x1xf32>
    %233 = vector.broadcast %232 : vector<8x1xf32> to vector<8x128xf32>
    %234 = arith.addf %230, %233 : vector<8x128xf32>
    %c3 = arith.constant 3 : index
    %c0_124 = arith.constant 0 : index
    %c0_125 = arith.constant 0 : index
    %235 = vector.load %arg11[%c3, %c0_124, %c0_125] : memref<5x24x144xbf16, #tpu.memory_space<vmem>>, vector<1x24x144xbf16>
    %236 = vector.shape_cast %235 : vector<1x24x144xbf16> to vector<24x144xbf16>
    %c3_126 = arith.constant 3 : index
    %c0_127 = arith.constant 0 : index
    %c0_128 = arith.constant 0 : index
    %237 = vector.load %arg12[%c3_126, %c0_127, %c0_128] : memref<5x24x1xf32, #tpu.memory_space<vmem>>, vector<1x24x1xf32>
    %238 = vector.shape_cast %237 : vector<1x24x1xf32> to vector<24x1xf32>
    %c7_i32_129 = arith.constant 7 : i32
    %239 = tpu.dynamic_rotate %234 by %c7_i32_129 dim 1 : vector<8x128xf32>, i32 -> vector<8x128xf32>
    %c6_i32_130 = arith.constant 6 : i32
    %240 = tpu.dynamic_rotate %234 by %c6_i32_130 dim 1 : vector<8x128xf32>, i32 -> vector<8x128xf32>
    %c5_i32_131 = arith.constant 5 : i32
    %241 = tpu.dynamic_rotate %234 by %c5_i32_131 dim 1 : vector<8x128xf32>, i32 -> vector<8x128xf32>
    %c4_i32_132 = arith.constant 4 : i32
    %242 = tpu.dynamic_rotate %234 by %c4_i32_132 dim 1 : vector<8x128xf32>, i32 -> vector<8x128xf32>
    %c3_i32_133 = arith.constant 3 : i32
    %243 = tpu.dynamic_rotate %234 by %c3_i32_133 dim 1 : vector<8x128xf32>, i32 -> vector<8x128xf32>
    %c2_i32_134 = arith.constant 2 : i32
    %244 = tpu.dynamic_rotate %234 by %c2_i32_134 dim 1 : vector<8x128xf32>, i32 -> vector<8x128xf32>
    %c1_i32_135 = arith.constant 1 : i32
    %245 = tpu.dynamic_rotate %234 by %c1_i32_135 dim 1 : vector<8x128xf32>, i32 -> vector<8x128xf32>
    %c127_i32_136 = arith.constant 127 : i32
    %246 = tpu.dynamic_rotate %234 by %c127_i32_136 dim 1 : vector<8x128xf32>, i32 -> vector<8x128xf32>
    %c126_i32_137 = arith.constant 126 : i32
    %247 = tpu.dynamic_rotate %234 by %c126_i32_137 dim 1 : vector<8x128xf32>, i32 -> vector<8x128xf32>
    %c125_i32_138 = arith.constant 125 : i32
    %248 = tpu.dynamic_rotate %234 by %c125_i32_138 dim 1 : vector<8x128xf32>, i32 -> vector<8x128xf32>
    %c124_i32_139 = arith.constant 124 : i32
    %249 = tpu.dynamic_rotate %234 by %c124_i32_139 dim 1 : vector<8x128xf32>, i32 -> vector<8x128xf32>
    %c123_i32_140 = arith.constant 123 : i32
    %250 = tpu.dynamic_rotate %234 by %c123_i32_140 dim 1 : vector<8x128xf32>, i32 -> vector<8x128xf32>
    %c122_i32_141 = arith.constant 122 : i32
    %251 = tpu.dynamic_rotate %234 by %c122_i32_141 dim 1 : vector<8x128xf32>, i32 -> vector<8x128xf32>
    %c121_i32_142 = arith.constant 121 : i32
    %252 = tpu.dynamic_rotate %234 by %c121_i32_142 dim 1 : vector<8x128xf32>, i32 -> vector<8x128xf32>
    %253 = tpu.concatenate %239, %240, %241, %242, %243, %244, %245, %234, %246, %247, %248, %249, %250, %251, %252 in 0 : vector<8x128xf32>, vector<8x128xf32>, vector<8x128xf32>, vector<8x128xf32>, vector<8x128xf32>, vector<8x128xf32>, vector<8x128xf32>, vector<8x128xf32>, vector<8x128xf32>, vector<8x128xf32>, vector<8x128xf32>, vector<8x128xf32>, vector<8x128xf32>, vector<8x128xf32>, vector<8x128xf32> -> vector<120x128xf32>
    %254 = arith.mulf %253, %0 : vector<120x128xf32>
    %c2_i32_143 = arith.constant 2 : i32
    %255 = tpu.dynamic_rotate %226 by %c2_i32_143 dim 1 : vector<24x128xf32>, i32 -> vector<24x128xf32>
    %256 = vector.extract_strided_slice %1 {offsets = [0, 0], sizes = [1, 128], strides = [1, 1]} : vector<5x128xf32> to vector<1x128xf32>
    %257 = vector.broadcast %256 : vector<1x128xf32> to vector<24x128xf32>
    %258 = arith.addf %255, %257 : vector<24x128xf32>
    %259 = arith.maximumf %226, %258 : vector<24x128xf32>
    %c1_i32_144 = arith.constant 1 : i32
    %260 = tpu.dynamic_rotate %226 by %c1_i32_144 dim 1 : vector<24x128xf32>, i32 -> vector<24x128xf32>
    %261 = vector.extract_strided_slice %1 {offsets = [1, 0], sizes = [1, 128], strides = [1, 1]} : vector<5x128xf32> to vector<1x128xf32>
    %262 = vector.broadcast %261 : vector<1x128xf32> to vector<24x128xf32>
    %263 = arith.addf %260, %262 : vector<24x128xf32>
    %264 = arith.maximumf %259, %263 : vector<24x128xf32>
    %c127_i32_145 = arith.constant 127 : i32
    %265 = tpu.dynamic_rotate %226 by %c127_i32_145 dim 1 : vector<24x128xf32>, i32 -> vector<24x128xf32>
    %266 = vector.extract_strided_slice %1 {offsets = [3, 0], sizes = [1, 128], strides = [1, 1]} : vector<5x128xf32> to vector<1x128xf32>
    %267 = vector.broadcast %266 : vector<1x128xf32> to vector<24x128xf32>
    %268 = arith.addf %265, %267 : vector<24x128xf32>
    %269 = arith.maximumf %264, %268 : vector<24x128xf32>
    %c126_i32_146 = arith.constant 126 : i32
    %270 = tpu.dynamic_rotate %226 by %c126_i32_146 dim 1 : vector<24x128xf32>, i32 -> vector<24x128xf32>
    %271 = vector.extract_strided_slice %1 {offsets = [4, 0], sizes = [1, 128], strides = [1, 1]} : vector<5x128xf32> to vector<1x128xf32>
    %272 = vector.broadcast %271 : vector<1x128xf32> to vector<24x128xf32>
    %273 = arith.addf %270, %272 : vector<24x128xf32>
    %274 = arith.maximumf %269, %273 : vector<24x128xf32>
    %275 = tpu.concatenate %254, %274 in 0 : vector<120x128xf32>, vector<24x128xf32> -> vector<144x128xf32>
    %276 = arith.truncf %275 : vector<144x128xf32> to vector<144x128xbf16>
    %cst_147 = arith.constant dense<0.000000e+00> : vector<24x128xf32>
    %277 = tpu.matmul %236, %276, %cst_147 {dimension_numbers = #tpu.dot_dimension_numbers<[1], [0], [0], [1], [0, 0, 1, 1], [], []>} : vector<24x144xbf16>, vector<144x128xbf16>, vector<24x128xf32> -> vector<24x128xf32>
    %278 = vector.broadcast %238 : vector<24x1xf32> to vector<24x128xf32>
    %279 = arith.addf %277, %278 : vector<24x128xf32>
    %cst_148 = arith.constant 0.000000e+00 : f32
    %280 = vector.broadcast %cst_148 : f32 to vector<24x128xf32>
    %281 = arith.maximumf %279, %280 : vector<24x128xf32>
    %c3_149 = arith.constant 3 : index
    %c0_150 = arith.constant 0 : index
    %c0_151 = arith.constant 0 : index
    %282 = vector.load %arg9[%c3_149, %c0_150, %c0_151] : memref<4x8x24xbf16, #tpu.memory_space<vmem>>, vector<1x8x24xbf16>
    %283 = vector.shape_cast %282 : vector<1x8x24xbf16> to vector<8x24xbf16>
    %284 = arith.truncf %281 : vector<24x128xf32> to vector<24x128xbf16>
    %cst_152 = arith.constant dense<0.000000e+00> : vector<8x128xf32>
    %285 = tpu.matmul %283, %284, %cst_152 {dimension_numbers = #tpu.dot_dimension_numbers<[1], [0], [0], [1], [0, 0, 1, 1], [], []>} : vector<8x24xbf16>, vector<24x128xbf16>, vector<8x128xf32> -> vector<8x128xf32>
    %c3_153 = arith.constant 3 : index
    %c0_154 = arith.constant 0 : index
    %c0_155 = arith.constant 0 : index
    %286 = vector.load %arg10[%c3_153, %c0_154, %c0_155] : memref<4x8x1xf32, #tpu.memory_space<vmem>>, vector<1x8x1xf32>
    %287 = vector.shape_cast %286 : vector<1x8x1xf32> to vector<8x1xf32>
    %288 = vector.broadcast %287 : vector<8x1xf32> to vector<8x128xf32>
    %289 = arith.addf %285, %288 : vector<8x128xf32>
    %c4 = arith.constant 4 : index
    %c0_156 = arith.constant 0 : index
    %c0_157 = arith.constant 0 : index
    %290 = vector.load %arg11[%c4, %c0_156, %c0_157] : memref<5x24x144xbf16, #tpu.memory_space<vmem>>, vector<1x24x144xbf16>
    %291 = vector.shape_cast %290 : vector<1x24x144xbf16> to vector<24x144xbf16>
    %c4_158 = arith.constant 4 : index
    %c0_159 = arith.constant 0 : index
    %c0_160 = arith.constant 0 : index
    %292 = vector.load %arg12[%c4_158, %c0_159, %c0_160] : memref<5x24x1xf32, #tpu.memory_space<vmem>>, vector<1x24x1xf32>
    %293 = vector.shape_cast %292 : vector<1x24x1xf32> to vector<24x1xf32>
    %c7_i32_161 = arith.constant 7 : i32
    %294 = tpu.dynamic_rotate %289 by %c7_i32_161 dim 1 : vector<8x128xf32>, i32 -> vector<8x128xf32>
    %c6_i32_162 = arith.constant 6 : i32
    %295 = tpu.dynamic_rotate %289 by %c6_i32_162 dim 1 : vector<8x128xf32>, i32 -> vector<8x128xf32>
    %c5_i32_163 = arith.constant 5 : i32
    %296 = tpu.dynamic_rotate %289 by %c5_i32_163 dim 1 : vector<8x128xf32>, i32 -> vector<8x128xf32>
    %c4_i32_164 = arith.constant 4 : i32
    %297 = tpu.dynamic_rotate %289 by %c4_i32_164 dim 1 : vector<8x128xf32>, i32 -> vector<8x128xf32>
    %c3_i32_165 = arith.constant 3 : i32
    %298 = tpu.dynamic_rotate %289 by %c3_i32_165 dim 1 : vector<8x128xf32>, i32 -> vector<8x128xf32>
    %c2_i32_166 = arith.constant 2 : i32
    %299 = tpu.dynamic_rotate %289 by %c2_i32_166 dim 1 : vector<8x128xf32>, i32 -> vector<8x128xf32>
    %c1_i32_167 = arith.constant 1 : i32
    %300 = tpu.dynamic_rotate %289 by %c1_i32_167 dim 1 : vector<8x128xf32>, i32 -> vector<8x128xf32>
    %c127_i32_168 = arith.constant 127 : i32
    %301 = tpu.dynamic_rotate %289 by %c127_i32_168 dim 1 : vector<8x128xf32>, i32 -> vector<8x128xf32>
    %c126_i32_169 = arith.constant 126 : i32
    %302 = tpu.dynamic_rotate %289 by %c126_i32_169 dim 1 : vector<8x128xf32>, i32 -> vector<8x128xf32>
    %c125_i32_170 = arith.constant 125 : i32
    %303 = tpu.dynamic_rotate %289 by %c125_i32_170 dim 1 : vector<8x128xf32>, i32 -> vector<8x128xf32>
    %c124_i32_171 = arith.constant 124 : i32
    %304 = tpu.dynamic_rotate %289 by %c124_i32_171 dim 1 : vector<8x128xf32>, i32 -> vector<8x128xf32>
    %c123_i32_172 = arith.constant 123 : i32
    %305 = tpu.dynamic_rotate %289 by %c123_i32_172 dim 1 : vector<8x128xf32>, i32 -> vector<8x128xf32>
    %c122_i32_173 = arith.constant 122 : i32
    %306 = tpu.dynamic_rotate %289 by %c122_i32_173 dim 1 : vector<8x128xf32>, i32 -> vector<8x128xf32>
    %c121_i32_174 = arith.constant 121 : i32
    %307 = tpu.dynamic_rotate %289 by %c121_i32_174 dim 1 : vector<8x128xf32>, i32 -> vector<8x128xf32>
    %308 = tpu.concatenate %294, %295, %296, %297, %298, %299, %300, %289, %301, %302, %303, %304, %305, %306, %307 in 0 : vector<8x128xf32>, vector<8x128xf32>, vector<8x128xf32>, vector<8x128xf32>, vector<8x128xf32>, vector<8x128xf32>, vector<8x128xf32>, vector<8x128xf32>, vector<8x128xf32>, vector<8x128xf32>, vector<8x128xf32>, vector<8x128xf32>, vector<8x128xf32>, vector<8x128xf32>, vector<8x128xf32> -> vector<120x128xf32>
    %309 = arith.mulf %308, %0 : vector<120x128xf32>
    %c2_i32_175 = arith.constant 2 : i32
    %310 = tpu.dynamic_rotate %281 by %c2_i32_175 dim 1 : vector<24x128xf32>, i32 -> vector<24x128xf32>
    %311 = vector.extract_strided_slice %1 {offsets = [0, 0], sizes = [1, 128], strides = [1, 1]} : vector<5x128xf32> to vector<1x128xf32>
    %312 = vector.broadcast %311 : vector<1x128xf32> to vector<24x128xf32>
    %313 = arith.addf %310, %312 : vector<24x128xf32>
    %314 = arith.maximumf %281, %313 : vector<24x128xf32>
    %c1_i32_176 = arith.constant 1 : i32
    %315 = tpu.dynamic_rotate %281 by %c1_i32_176 dim 1 : vector<24x128xf32>, i32 -> vector<24x128xf32>
    %316 = vector.extract_strided_slice %1 {offsets = [1, 0], sizes = [1, 128], strides = [1, 1]} : vector<5x128xf32> to vector<1x128xf32>
    %317 = vector.broadcast %316 : vector<1x128xf32> to vector<24x128xf32>
    %318 = arith.addf %315, %317 : vector<24x128xf32>
    %319 = arith.maximumf %314, %318 : vector<24x128xf32>
    %c127_i32_177 = arith.constant 127 : i32
    %320 = tpu.dynamic_rotate %281 by %c127_i32_177 dim 1 : vector<24x128xf32>, i32 -> vector<24x128xf32>
    %321 = vector.extract_strided_slice %1 {offsets = [3, 0], sizes = [1, 128], strides = [1, 1]} : vector<5x128xf32> to vector<1x128xf32>
    %322 = vector.broadcast %321 : vector<1x128xf32> to vector<24x128xf32>
    %323 = arith.addf %320, %322 : vector<24x128xf32>
    %324 = arith.maximumf %319, %323 : vector<24x128xf32>
    %c126_i32_178 = arith.constant 126 : i32
    %325 = tpu.dynamic_rotate %281 by %c126_i32_178 dim 1 : vector<24x128xf32>, i32 -> vector<24x128xf32>
    %326 = vector.extract_strided_slice %1 {offsets = [4, 0], sizes = [1, 128], strides = [1, 1]} : vector<5x128xf32> to vector<1x128xf32>
    %327 = vector.broadcast %326 : vector<1x128xf32> to vector<24x128xf32>
    %328 = arith.addf %325, %327 : vector<24x128xf32>
    %329 = arith.maximumf %324, %328 : vector<24x128xf32>
    %330 = tpu.concatenate %309, %329 in 0 : vector<120x128xf32>, vector<24x128xf32> -> vector<144x128xf32>
    %331 = arith.truncf %330 : vector<144x128xf32> to vector<144x128xbf16>
    %cst_179 = arith.constant dense<0.000000e+00> : vector<24x128xf32>
    %332 = tpu.matmul %291, %331, %cst_179 {dimension_numbers = #tpu.dot_dimension_numbers<[1], [0], [0], [1], [0, 0, 1, 1], [], []>} : vector<24x144xbf16>, vector<144x128xbf16>, vector<24x128xf32> -> vector<24x128xf32>
    %333 = vector.broadcast %293 : vector<24x1xf32> to vector<24x128xf32>
    %334 = arith.addf %332, %333 : vector<24x128xf32>
    %cst_180 = arith.constant 0.000000e+00 : f32
    %335 = vector.broadcast %cst_180 : f32 to vector<24x128xf32>
    %336 = arith.maximumf %334, %335 : vector<24x128xf32>
    %337 = arith.addf %336, %178 : vector<24x128xf32>
    %338 = arith.truncf %337 : vector<24x128xf32> to vector<24x128xbf16>
    %c0_181 = arith.constant 0 : index
    %c0_182 = arith.constant 0 : index
    %339 = vector.load %arg4[%c0_181, %c0_182] : memref<128x8xbf16, #tpu.memory_space<vmem>>, vector<128x8xbf16>
    %cst_183 = arith.constant dense<0.000000e+00> : vector<24x8xf32>
    %340 = tpu.matmul %338, %339, %cst_183 {dimension_numbers = #tpu.dot_dimension_numbers<[1], [0], [0], [1], [0, 0, 1, 1], [], []>} : vector<24x128xbf16>, vector<128x8xbf16>, vector<24x8xf32> -> vector<24x8xf32>
    %c0_184 = arith.constant 0 : index
    %c0_185 = arith.constant 0 : index
    %341 = vector.load %arg15[%c0_184, %c0_185] : memref<3x24xbf16, #tpu.memory_space<vmem>>, vector<3x24xbf16>
    %342 = arith.truncf %340 : vector<24x8xf32> to vector<24x8xbf16>
    %cst_186 = arith.constant dense<0.000000e+00> : vector<3x8xf32>
    %343 = tpu.matmul %341, %342, %cst_186 {dimension_numbers = #tpu.dot_dimension_numbers<[1], [0], [0], [1], [0, 0, 1, 1], [], []>} : vector<3x24xbf16>, vector<24x8xbf16>, vector<3x8xf32> -> vector<3x8xf32>
    %c0_187 = arith.constant 0 : index
    %c0_188 = arith.constant 0 : index
    %344 = vector.load %arg16[%c0_187, %c0_188] : memref<3x1xf32, #tpu.memory_space<vmem>>, vector<3x1xf32>
    %345 = vector.broadcast %344 : vector<3x1xf32> to vector<3x8xf32>
    %346 = arith.addf %343, %345 : vector<3x8xf32>
    %cst_189 = arith.constant dense<0xFF800000> : vector<8xf32>
    %347 = vector.multi_reduction <maximumf>, %346, %cst_189 [0] : vector<3x8xf32> to vector<8xf32>
    %348 = vector.shape_cast %347 : vector<8xf32> to vector<1x8xf32>
    %349 = vector.broadcast %348 : vector<1x8xf32> to vector<3x8xf32>
    %350 = arith.subf %346, %349 : vector<3x8xf32>
    %351 = math.exp %350 : vector<3x8xf32>
    %cst_190 = arith.constant dense<0.000000e+00> : vector<8xf32>
    %352 = vector.multi_reduction <add>, %351, %cst_190 [0] : vector<3x8xf32> to vector<8xf32>
    %353 = vector.shape_cast %352 : vector<8xf32> to vector<1x8xf32>
    %354 = math.log %353 : vector<1x8xf32>
    %355 = vector.broadcast %354 : vector<1x8xf32> to vector<3x8xf32>
    %356 = arith.subf %350, %355 : vector<3x8xf32>
    %c0_191 = arith.constant 0 : index
    %c0_192 = arith.constant 0 : index
    %c0_193 = arith.constant 0 : index
    %357 = vector.load %arg17[%c0_191, %c0_192, %c0_193] : memref<1x3x8xf32, #tpu.memory_space<vmem>>, vector<1x3x8xf32>
    %358 = vector.shape_cast %357 : vector<1x3x8xf32> to vector<3x8xf32>
    %359 = vector.shape_cast %356 : vector<3x8xf32> to vector<1x3x8xf32>
    tpu.vector_store %arg17[%c0_191, %c0_192, %c0_193], %359 {strides = array<i32>} : memref<1x3x8xf32, #tpu.memory_space<vmem>>, vector<1x3x8xf32>,
    return
  }
  func.func @transform_0(%arg0: i32) -> (i32, i32, i32) {
    %c0_i32 = arith.constant 0 : i32
    %c0_i32_0 = arith.constant 0 : i32
    %c0_i32_1 = arith.constant 0 : i32
    return %arg0, %c0_i32, %c0_i32_0 : i32, i32, i32
  }
  func.func @transform_1(%arg0: i32) -> (i32, i32) {
    %c0_i32 = arith.constant 0 : i32
    %c0_i32_0 = arith.constant 0 : i32
    %c0_i32_1 = arith.constant 0 : i32
    return %c0_i32, %c0_i32_0 : i32, i32
  }
  func.func @transform_2(%arg0: i32) -> (i32, i32) {
    %c0_i32 = arith.constant 0 : i32
    %c0_i32_0 = arith.constant 0 : i32
    %c0_i32_1 = arith.constant 0 : i32
    return %c0_i32, %c0_i32_0 : i32, i32
  }
  func.func @transform_3(%arg0: i32) -> (i32, i32) {
    %c0_i32 = arith.constant 0 : i32
    %c0_i32_0 = arith.constant 0 : i32
    %c0_i32_1 = arith.constant 0 : i32
    return %c0_i32, %c0_i32_0 : i32, i32
  }
  func.func @transform_4(%arg0: i32) -> (i32, i32) {
    %c0_i32 = arith.constant 0 : i32
    %c0_i32_0 = arith.constant 0 : i32
    %c0_i32_1 = arith.constant 0 : i32
    return %c0_i32, %c0_i32_0 : i32, i32
  }
  func.func @transform_5(%arg0: i32) -> (i32, i32) {
    %c0_i32 = arith.constant 0 : i32
    %c0_i32_0 = arith.constant 0 : i32
    %c0_i32_1 = arith.constant 0 : i32
    return %c0_i32, %c0_i32_0 : i32, i32
  }
  func.func @transform_6(%arg0: i32) -> (i32, i32) {
    %c0_i32 = arith.constant 0 : i32
    %c0_i32_0 = arith.constant 0 : i32
    %c0_i32_1 = arith.constant 0 : i32
    return %c0_i32, %c0_i32_0 : i32, i32
  }
  func.func @transform_7(%arg0: i32) -> (i32, i32) {
    %c0_i32 = arith.constant 0 : i32
    %c0_i32_0 = arith.constant 0 : i32
    %c0_i32_1 = arith.constant 0 : i32
    return %c0_i32, %c0_i32_0 : i32, i32
  }
  func.func @transform_8(%arg0: i32) -> (i32, i32, i32) {
    %c0_i32 = arith.constant 0 : i32
    %c0_i32_0 = arith.constant 0 : i32
    %c0_i32_1 = arith.constant 0 : i32
    %c0_i32_2 = arith.constant 0 : i32
    return %c0_i32, %c0_i32_0, %c0_i32_1 : i32, i32, i32
  }
  func.func @transform_9(%arg0: i32) -> (i32, i32, i32) {
    %c0_i32 = arith.constant 0 : i32
    %c0_i32_0 = arith.constant 0 : i32
    %c0_i32_1 = arith.constant 0 : i32
    %c0_i32_2 = arith.constant 0 : i32
    return %c0_i32, %c0_i32_0, %c0_i32_1 : i32, i32, i32
  }
  func.func @transform_10(%arg0: i32) -> (i32, i32, i32) {
    %c0_i32 = arith.constant 0 : i32
    %c0_i32_0 = arith.constant 0 : i32
    %c0_i32_1 = arith.constant 0 : i32
    %c0_i32_2 = arith.constant 0 : i32
    return %c0_i32, %c0_i32_0, %c0_i32_1 : i32, i32, i32
  }
  func.func @transform_11(%arg0: i32) -> (i32, i32, i32) {
    %c0_i32 = arith.constant 0 : i32
    %c0_i32_0 = arith.constant 0 : i32
    %c0_i32_1 = arith.constant 0 : i32
    %c0_i32_2 = arith.constant 0 : i32
    return %c0_i32, %c0_i32_0, %c0_i32_1 : i32, i32, i32
  }
  func.func @transform_12(%arg0: i32) -> (i32, i32) {
    %c0_i32 = arith.constant 0 : i32
    %c0_i32_0 = arith.constant 0 : i32
    %c0_i32_1 = arith.constant 0 : i32
    return %c0_i32, %c0_i32_0 : i32, i32
  }
  func.func @transform_13(%arg0: i32) -> (i32, i32) {
    %c0_i32 = arith.constant 0 : i32
    %c0_i32_0 = arith.constant 0 : i32
    %c0_i32_1 = arith.constant 0 : i32
    return %c0_i32, %c0_i32_0 : i32, i32
  }
  func.func @transform_14(%arg0: i32) -> (i32, i32) {
    %c0_i32 = arith.constant 0 : i32
    %c0_i32_0 = arith.constant 0 : i32
    %c0_i32_1 = arith.constant 0 : i32
    return %c0_i32, %c0_i32_0 : i32, i32
  }
  func.func @transform_15(%arg0: i32) -> (i32, i32) {
    %c0_i32 = arith.constant 0 : i32
    %c0_i32_0 = arith.constant 0 : i32
    %c0_i32_1 = arith.constant 0 : i32
    return %c0_i32, %c0_i32_0 : i32, i32
  }
  func.func @transform_16(%arg0: i32) -> (i32, i32, i32) {
    %c0_i32 = arith.constant 0 : i32
    %c0_i32_0 = arith.constant 0 : i32
    %c0_i32_1 = arith.constant 0 : i32
    return %arg0, %c0_i32, %c0_i32_0 : i32, i32, i32
  }
}

</mosaic_0001>

<llo_original>
// kernel: eeg_inception_mi_forward.1
$region0: #{eeg_inception_mi_forward.1}
  #allocation0 [shape = 'u32[]', space=smem, size = 0x4, offset = 0x4, fixed_abs, tag = 'smem constant byte address 0x4 - core index']
  #allocation1 [shape = 'u32[72,128]{1,0:T(1,128)}', space=vmem, size = 0x9000, scoped, tag = 'internal scratch']
  %s0 = inlined_call_operand.vmem [shape: f32[2,4,128], index: 0, kind: input, shape index: {}]
  %s1 = inlined_call_operand.vmem [shape: f32[120,128], index: 1, kind: input, shape index: {}]
  %s2 = inlined_call_operand.vmem [shape: f32[5,128], index: 2, kind: input, shape index: {}]
  %s3 = inlined_call_operand.vmem [shape: bf16[128,8], index: 3, kind: input, shape index: {}]
  %s4 = inlined_call_operand.vmem [shape: bf16[32,4], index: 4, kind: input, shape index: {}]
  %s5 = inlined_call_operand.vmem [shape: f32[32,1], index: 5, kind: input, shape index: {}]
  %s6 = inlined_call_operand.vmem [shape: bf16[24,124], index: 6, kind: input, shape index: {}]
  %s7 = inlined_call_operand.vmem [shape: f32[24,1], index: 7, kind: input, shape index: {}]
  %s8 = inlined_call_operand.vmem [shape: bf16[4,8,24], index: 8, kind: input, shape index: {}]
  %s9 = inlined_call_operand.vmem [shape: f32[4,8,1], index: 9, kind: input, shape index: {}]
  %s10 = inlined_call_operand.vmem [shape: bf16[5,24,144], index: 10, kind: input, shape index: {}]
  %s11 = inlined_call_operand.vmem [shape: f32[5,24,1], index: 11, kind: input, shape index: {}]
  %s12 = inlined_call_operand.vmem [shape: bf16[32,24], index: 12, kind: input, shape index: {}]
  %s13 = inlined_call_operand.vmem [shape: f32[32,1], index: 13, kind: input, shape index: {}]
  %s14 = inlined_call_operand.vmem [shape: bf16[3,24], index: 14, kind: input, shape index: {}]
  %s15 = inlined_call_operand.vmem [shape: f32[3,1], index: 15, kind: input, shape index: {}]
  %s16 = inlined_call_operand.vmem [shape: f32[2,3,8], index: 16, kind: output, shape index: {}]
  %s17 = sld [smem:[#allocation0]]
  $region97: #{eeg_inception_mi_forward.1} parent=0
    _
  %s19 = ssub.s32 1, %s17
  %s20 = scalar_select 0, %s19, %s17
  loop: start=0, step=1, limit=4
  $region2: #{eeg_inception_mi_forward.1} parent=0 // loop_pre_header
    _
  $region3: #{eeg_inception_mi_forward.1} parent=0 // loop_header
    %s22 = sphi 0, %s26
    %p23 = scmp.ge.s32.totalorder %s22, 4
    %s32 = sphi 0, %s34
    %s35 = sphi 0, %s32
    %s36 = sphi 0, %s35
    %s52 = sphi 0, %s36
    %s56 = sphi 0, %s56
    %s58 = sphi 0, %s56
    %s59 = sphi 0, %s58
    %s73 = sphi 0, %s59
    %s77 = sphi 0, %s77
    %s79 = sphi 0, %s77
    %s80 = sphi 0, %s79
    %s94 = sphi 0, %s80
    %s98 = sphi 0, %s98
    %s100 = sphi 0, %s98
    %s101 = sphi 0, %s100
    %s115 = sphi 0, %s101
    %s119 = sphi 0, %s119
    %s121 = sphi 0, %s119
    %s122 = sphi 0, %s121
    %s136 = sphi 0, %s122
    %s140 = sphi 0, %s140
    %s142 = sphi 0, %s140
    %s143 = sphi 0, %s142
    %s157 = sphi 0, %s143
    %s161 = sphi 0, %s161
    %s163 = sphi 0, %s161
    %s164 = sphi 0, %s163
    %s178 = sphi 0, %s164
    %s182 = sphi 0, %s182
    %s184 = sphi 0, %s182
    %s185 = sphi 0, %s184
    %s199 = sphi 0, %s185
    %s203 = sphi 0, %s203
    %s205 = sphi 0, %s203
    %s206 = sphi 0, %s205
    %s220 = sphi 0, %s206
    %s224 = sphi 0, %s224
    %s226 = sphi 0, %s224
    %s227 = sphi 0, %s226
    %s241 = sphi 0, %s227
    %s245 = sphi 0, %s245
    %s247 = sphi 0, %s245
    %s248 = sphi 0, %s247
    %s262 = sphi 0, %s248
    %s266 = sphi 0, %s266
    %s268 = sphi 0, %s266
    %s269 = sphi 0, %s268
    %s283 = sphi 0, %s269
    %s287 = sphi 0, %s287
    %s289 = sphi 0, %s287
    %s290 = sphi 0, %s289
    %s304 = sphi 0, %s290
    %s308 = sphi 0, %s308
    %s310 = sphi 0, %s308
    %s311 = sphi 0, %s310
    %s325 = sphi 0, %s311
    %s329 = sphi 0, %s329
    %s331 = sphi 0, %s329
    %s332 = sphi 0, %s331
    %s346 = sphi 0, %s332
    %s350 = sphi 0, %s350
    %s352 = sphi 0, %s350
    %s353 = sphi 0, %s352
    %s367 = sphi 0, %s353
    %s373 = sphi 0, %s375
    %s376 = sphi 0, %s373
    %s377 = sphi 0, %s376
    %s393 = sphi 0, %s377
  $region4: #{eeg_inception_mi_forward.1} parent=0 // loop_header_branch
    %25 = sbr.rel (%p23) target = $region8
  $region5: #{eeg_inception_mi_forward.1} parent=0 // loop_body
    %s27 = ssub.s32 %s22, 1
    %s28 = ssub.s32 %s22, 2
    %s29 = sadd.s32 %s22, 1
    %s30 = ssub.s32 %s22, %s29
    %p31 = scmp.eq.s32.totalorder %s30, 0
    %s33 = sadd.s32 %s32, 1
    %s34 = scalar_select %p31, %s32, %s33
    %p37 = pneg %p31
    %p38 = scmp.eq.s32.totalorder %s22, 1
    %p39 = por %p37, %p38
    %p40 = scmp.ne.s32.totalorder %s32, %s35
    %p41 = scmp.eq.s32.totalorder %s22, 0
    %p42 = por %p40, %p41
    %p43 = scmp.ne.s32.totalorder %s32, %s35
    %p44 = scmp.eq.s32.totalorder %s27, 1
    %p45 = por %p43, %p44
    %p46 = scmp.ne.s32.totalorder %s35, %s36
    %p47 = scmp.eq.s32.totalorder %s27, 0
    %p48 = por %p46, %p47
    %p49 = scmp.ne.s32.totalorder %s35, %s36
    %p50 = scmp.eq.s32.totalorder %s28, 1
    %p51 = por %p49, %p50
    %p53 = scmp.ne.s32.totalorder %s36, %s52
    %p54 = scmp.eq.s32.totalorder %s28, 0
    %p55 = por %p53, %p54
    %s57 = sadd.s32 %s56, 1
    %p60 = scmp.eq.s32.totalorder %s22, 1
    %p61 = scmp.ne.s32.totalorder %s56, %s58
    %p62 = scmp.eq.s32.totalorder %s22, 0
    %p63 = por %p61, %p62
    %p64 = scmp.ne.s32.totalorder %s56, %s58
    %p65 = scmp.eq.s32.totalorder %s27, 1
    %p66 = por %p64, %p65
    %p67 = scmp.ne.s32.totalorder %s58, %s59
    %p68 = scmp.eq.s32.totalorder %s27, 0
    %p69 = por %p67, %p68
    %p70 = scmp.ne.s32.totalorder %s58, %s59
    %p71 = scmp.eq.s32.totalorder %s28, 1
    %p72 = por %p70, %p71
    %p74 = scmp.ne.s32.totalorder %s59, %s73
    %p75 = scmp.eq.s32.totalorder %s28, 0
    %p76 = por %p74, %p75
    %s78 = sadd.s32 %s77, 1
    %p81 = scmp.eq.s32.totalorder %s22, 1
    %p82 = scmp.ne.s32.totalorder %s77, %s79
    %p83 = scmp.eq.s32.totalorder %s22, 0
    %p84 = por %p82, %p83
    %p85 = scmp.ne.s32.totalorder %s77, %s79
    %p86 = scmp.eq.s32.totalorder %s27, 1
    %p87 = por %p85, %p86
    %p88 = scmp.ne.s32.totalorder %s79, %s80
    %p89 = scmp.eq.s32.totalorder %s27, 0
    %p90 = por %p88, %p89
    %p91 = scmp.ne.s32.totalorder %s79, %s80
    %p92 = scmp.eq.s32.totalorder %s28, 1
    %p93 = por %p91, %p92
    %p95 = scmp.ne.s32.totalorder %s80, %s94
    %p96 = scmp.eq.s32.totalorder %s28, 0
    %p97 = por %p95, %p96
    %s99 = sadd.s32 %s98, 1
    %p102 = scmp.eq.s32.totalorder %s22, 1
    %p103 = scmp.ne.s32.totalorder %s98, %s100
    %p104 = scmp.eq.s32.totalorder %s22, 0
    %p105 = por %p103, %p104
    %p106 = scmp.ne.s32.totalorder %s98, %s100
    %p107 = scmp.eq.s32.totalorder %s27, 1
    %p108 = por %p106, %p107
    %p109 = scmp.ne.s32.totalorder %s100, %s101
    %p110 = scmp.eq.s32.totalorder %s27, 0
    %p111 = por %p109, %p110
    %p112 = scmp.ne.s32.totalorder %s100, %s101
    %p113 = scmp.eq.s32.totalorder %s28, 1
    %p114 = por %p112, %p113
    %p116 = scmp.ne.s32.totalorder %s101, %s115
    %p117 = scmp.eq.s32.totalorder %s28, 0
    %p118 = por %p116, %p117
    %s120 = sadd.s32 %s119, 1
    %p123 = scmp.eq.s32.totalorder %s22, 1
    %p124 = scmp.ne.s32.totalorder %s119, %s121
    %p125 = scmp.eq.s32.totalorder %s22, 0
    %p126 = por %p124, %p125
    %p127 = scmp.ne.s32.totalorder %s119, %s121
    %p128 = scmp.eq.s32.totalorder %s27, 1
    %p129 = por %p127, %p128
    %p130 = scmp.ne.s32.totalorder %s121, %s122
    %p131 = scmp.eq.s32.totalorder %s27, 0
    %p132 = por %p130, %p131
    %p133 = scmp.ne.s32.totalorder %s121, %s122
    %p134 = scmp.eq.s32.totalorder %s28, 1
    %p135 = por %p133, %p134
    %p137 = scmp.ne.s32.totalorder %s122, %s136
    %p138 = scmp.eq.s32.totalorder %s28, 0
    %p139 = por %p137, %p138
    %s141 = sadd.s32 %s140, 1
    %p144 = scmp.eq.s32.totalorder %s22, 1
    %p145 = scmp.ne.s32.totalorder %s140, %s142
    %p146 = scmp.eq.s32.totalorder %s22, 0
    %p147 = por %p145, %p146
    %p148 = scmp.ne.s32.totalorder %s140, %s142
    %p149 = scmp.eq.s32.totalorder %s27, 1
    %p150 = por %p148, %p149
    %p151 = scmp.ne.s32.totalorder %s142, %s143
    %p152 = scmp.eq.s32.totalorder %s27, 0
    %p153 = por %p151, %p152
    %p154 = scmp.ne.s32.totalorder %s142, %s143
    %p155 = scmp.eq.s32.totalorder %s28, 1
    %p156 = por %p154, %p155
    %p158 = scmp.ne.s32.totalorder %s143, %s157
    %p159 = scmp.eq.s32.totalorder %s28, 0
    %p160 = por %p158, %p159
    %s162 = sadd.s32 %s161, 1
    %p165 = scmp.eq.s32.totalorder %s22, 1
    %p166 = scmp.ne.s32.totalorder %s161, %s163
    %p167 = scmp.eq.s32.totalorder %s22, 0
    %p168 = por %p166, %p167
    %p169 = scmp.ne.s32.totalorder %s161, %s163
    %p170 = scmp.eq.s32.totalorder %s27, 1
    %p171 = por %p169, %p170
    %p172 = scmp.ne.s32.totalorder %s163, %s164
    %p173 = scmp.eq.s32.totalorder %s27, 0
    %p174 = por %p172, %p173
    %p175 = scmp.ne.s32.totalorder %s163, %s164
    %p176 = scmp.eq.s32.totalorder %s28, 1
    %p177 = por %p175, %p176
    %p179 = scmp.ne.s32.totalorder %s164, %s178
    %p180 = scmp.eq.s32.totalorder %s28, 0
    %p181 = por %p179, %p180
    %s183 = sadd.s32 %s182, 1
    %p186 = scmp.eq.s32.totalorder %s22, 1
    %p187 = scmp.ne.s32.totalorder %s182, %s184
    %p188 = scmp.eq.s32.totalorder %s22, 0
    %p189 = por %p187, %p188
    %p190 = scmp.ne.s32.totalorder %s182, %s184
    %p191 = scmp.eq.s32.totalorder %s27, 1
    %p192 = por %p190, %p191
    %p193 = scmp.ne.s32.totalorder %s184, %s185
    %p194 = scmp.eq.s32.totalorder %s27, 0
    %p195 = por %p193, %p194
    %p196 = scmp.ne.s32.totalorder %s184, %s185
    %p197 = scmp.eq.s32.totalorder %s28, 1
    %p198 = por %p196, %p197
    %p200 = scmp.ne.s32.totalorder %s185, %s199
    %p201 = scmp.eq.s32.totalorder %s28, 0
    %p202 = por %p200, %p201
    %s204 = sadd.s32 %s203, 1
    %p207 = scmp.eq.s32.totalorder %s22, 1
    %p208 = scmp.ne.s32.totalorder %s203, %s205
    %p209 = scmp.eq.s32.totalorder %s22, 0
    %p210 = por %p208, %p209
    %p211 = scmp.ne.s32.totalorder %s203, %s205
    %p212 = scmp.eq.s32.totalorder %s27, 1
    %p213 = por %p211, %p212
    %p214 = scmp.ne.s32.totalorder %s205, %s206
    %p215 = scmp.eq.s32.totalorder %s27, 0
    %p216 = por %p214, %p215
    %p217 = scmp.ne.s32.totalorder %s205, %s206
    %p218 = scmp.eq.s32.totalorder %s28, 1
    %p219 = por %p217, %p218
    %p221 = scmp.ne.s32.totalorder %s206, %s220
    %p222 = scmp.eq.s32.totalorder %s28, 0
    %p223 = por %p221, %p222
    %s225 = sadd.s32 %s224, 1
    %p228 = scmp.eq.s32.totalorder %s22, 1
    %p229 = scmp.ne.s32.totalorder %s224, %s226
    %p230 = scmp.eq.s32.totalorder %s22, 0
    %p231 = por %p229, %p230
    %p232 = scmp.ne.s32.totalorder %s224, %s226
    %p233 = scmp.eq.s32.totalorder %s27, 1
    %p234 = por %p232, %p233
    %p235 = scmp.ne.s32.totalorder %s226, %s227
    %p236 = scmp.eq.s32.totalorder %s27, 0
    %p237 = por %p235, %p236
    %p238 = scmp.ne.s32.totalorder %s226, %s227
    %p239 = scmp.eq.s32.totalorder %s28, 1
    %p240 = por %p238, %p239
    %p242 = scmp.ne.s32.totalorder %s227, %s241
    %p243 = scmp.eq.s32.totalorder %s28, 0
    %p244 = por %p242, %p243
    %s246 = sadd.s32 %s245, 1
    %p249 = scmp.eq.s32.totalorder %s22, 1
    %p250 = scmp.ne.s32.totalorder %s245, %s247
    %p251 = scmp.eq.s32.totalorder %s22, 0
    %p252 = por %p250, %p251
    %p253 = scmp.ne.s32.totalorder %s245, %s247
    %p254 = scmp.eq.s32.totalorder %s27, 1
    %p255 = por %p253, %p254
    %p256 = scmp.ne.s32.totalorder %s247, %s248
    %p257 = scmp.eq.s32.totalorder %s27, 0
    %p258 = por %p256, %p257
    %p259 = scmp.ne.s32.totalorder %s247, %s248
    %p260 = scmp.eq.s32.totalorder %s28, 1
    %p261 = por %p259, %p260
    %p263 = scmp.ne.s32.totalorder %s248, %s262
    %p264 = scmp.eq.s32.totalorder %s28, 0
    %p265 = por %p263, %p264
    %s267 = sadd.s32 %s266, 1
    %p270 = scmp.eq.s32.totalorder %s22, 1
    %p271 = scmp.ne.s32.totalorder %s266, %s268
    %p272 = scmp.eq.s32.totalorder %s22, 0
    %p273 = por %p271, %p272
    %p274 = scmp.ne.s32.totalorder %s266, %s268
    %p275 = scmp.eq.s32.totalorder %s27, 1
    %p276 = por %p274, %p275
    %p277 = scmp.ne.s32.totalorder %s268, %s269
    %p278 = scmp.eq.s32.totalorder %s27, 0
    %p279 = por %p277, %p278
    %p280 = scmp.ne.s32.totalorder %s268, %s269
    %p281 = scmp.eq.s32.totalorder %s28, 1
    %p282 = por %p280, %p281
    %p284 = scmp.ne.s32.totalorder %s269, %s283
    %p285 = scmp.eq.s32.totalorder %s28, 0
    %p286 = por %p284, %p285
    %s288 = sadd.s32 %s287, 1
    %p291 = scmp.eq.s32.totalorder %s22, 1
    %p292 = scmp.ne.s32.totalorder %s287, %s289
    %p293 = scmp.eq.s32.totalorder %s22, 0
    %p294 = por %p292, %p293
    %p295 = scmp.ne.s32.totalorder %s287, %s289
    %p296 = scmp.eq.s32.totalorder %s27, 1
    %p297 = por %p295, %p296
    %p298 = scmp.ne.s32.totalorder %s289, %s290
    %p299 = scmp.eq.s32.totalorder %s27, 0
    %p300 = por %p298, %p299
    %p301 = scmp.ne.s32.totalorder %s289, %s290
    %p302 = scmp.eq.s32.totalorder %s28, 1
    %p303 = por %p301, %p302
    %p305 = scmp.ne.s32.totalorder %s290, %s304
    %p306 = scmp.eq.s32.totalorder %s28, 0
    %p307 = por %p305, %p306
    %s309 = sadd.s32 %s308, 1
    %p312 = scmp.eq.s32.totalorder %s22, 1
    %p313 = scmp.ne.s32.totalorder %s308, %s310
    %p314 = scmp.eq.s32.totalorder %s22, 0
    %p315 = por %p313, %p314
    %p316 = scmp.ne.s32.totalorder %s308, %s310
    %p317 = scmp.eq.s32.totalorder %s27, 1
    %p318 = por %p316, %p317
    %p319 = scmp.ne.s32.totalorder %s310, %s311
    %p320 = scmp.eq.s32.totalorder %s27, 0
    %p321 = por %p319, %p320
    %p322 = scmp.ne.s32.totalorder %s310, %s311
    %p323 = scmp.eq.s32.totalorder %s28, 1
    %p324 = por %p322, %p323
    %p326 = scmp.ne.s32.totalorder %s311, %s325
    %p327 = scmp.eq.s32.totalorder %s28, 0
    %p328 = por %p326, %p327
    %s330 = sadd.s32 %s329, 1
    %p333 = scmp.eq.s32.totalorder %s22, 1
    %p334 = scmp.ne.s32.totalorder %s329, %s331
    %p335 = scmp.eq.s32.totalorder %s22, 0
    %p336 = por %p334, %p335
    %p337 = scmp.ne.s32.totalorder %s329, %s331
    %p338 = scmp.eq.s32.totalorder %s27, 1
    %p339 = por %p337, %p338
    %p340 = scmp.ne.s32.totalorder %s331, %s332
    %p341 = scmp.eq.s32.totalorder %s27, 0
    %p342 = por %p340, %p341
    %p343 = scmp.ne.s32.totalorder %s331, %s332
    %p344 = scmp.eq.s32.totalorder %s28, 1
    %p345 = por %p343, %p344
    %p347 = scmp.ne.s32.totalorder %s332, %s346
    %p348 = scmp.eq.s32.totalorder %s28, 0
    %p349 = por %p347, %p348
    %s351 = sadd.s32 %s350, 1
    %p354 = scmp.eq.s32.totalorder %s22, 1
    %p355 = scmp.ne.s32.totalorder %s350, %s352
    %p356 = scmp.eq.s32.totalorder %s22, 0
    %p357 = por %p355, %p356
    %p358 = scmp.ne.s32.totalorder %s350, %s352
    %p359 = scmp.eq.s32.totalorder %s27, 1
    %p360 = por %p358, %p359
    %p361 = scmp.ne.s32.totalorder %s352, %s353
    %p362 = scmp.eq.s32.totalorder %s27, 0
    %p363 = por %p361, %p362
    %p364 = scmp.ne.s32.totalorder %s352, %s353
    %p365 = scmp.eq.s32.totalorder %s28, 1
    %p366 = por %p364, %p365
    %p368 = scmp.ne.s32.totalorder %s353, %s367
    %p369 = scmp.eq.s32.totalorder %s28, 0
    %p370 = por %p368, %p369
    %s371 = ssub.s32 %s22, %s29
    %p372 = scmp.eq.s32.totalorder %s371, 0
    %s374 = sadd.s32 %s373, 1
    %s375 = scalar_select %p372, %s373, %s374
    %p378 = pneg %p372
    %p379 = scmp.eq.s32.totalorder %s22, 1
    %p380 = por %p378, %p379
    %p381 = scmp.ne.s32.totalorder %s373, %s376
    %p382 = scmp.eq.s32.totalorder %s22, 0
    %p383 = por %p381, %p382
    %p384 = scmp.ne.s32.totalorder %s373, %s376
    %p385 = scmp.eq.s32.totalorder %s27, 1
    %p386 = por %p384, %p385
    %p387 = scmp.ne.s32.totalorder %s376, %s377
    %p388 = scmp.eq.s32.totalorder %s27, 0
    %p389 = por %p387, %p388
    %p390 = scmp.ne.s32.totalorder %s376, %s377
    %p391 = scmp.eq.s32.totalorder %s28, 1
    %p392 = por %p390, %p391
    %p394 = scmp.ne.s32.totalorder %s377, %s393
    %p395 = scmp.eq.s32.totalorder %s28, 0
    %p396 = por %p394, %p395
    %p397 = scmp.le.s32.totalorder 1, %s22
    %p398 = scmp.lt.s32.totalorder %s22, 3
    %p399 = pnand %p397, %p398
    %p400 = pneg %p399
    // Predicated region
    $region9: #{eeg_inception_mi_forward.1} parent=5 // pred_check
      _
    $region10: #{eeg_inception_mi_forward.1} parent=5 // pred_check_branch
      %402 = sbr.rel (%p399) target = $region12
    $region11: #{eeg_inception_mi_forward.1} parent=5 // pred_region
      %s403 = ssub.s32 %s22, 1
      // Predicated region
      $region13: #{eeg_inception_mi_forward.1} parent=11 // pred_check
        %p404 = pneg %p69
      $region14: #{eeg_inception_mi_forward.1} parent=11 // pred_check_branch
        %406 = sbr.rel (%p404) target = $region16
      $region15: #{eeg_inception_mi_forward.1} parent=11 // pred_region
        _
      $region16: #{eeg_inception_mi_forward.1} parent=11 // pred_fallthru
        _
      // Predicated region
      $region17: #{eeg_inception_mi_forward.1} parent=11 // pred_check
        %p407 = pneg %p90
      $region18: #{eeg_inception_mi_forward.1} parent=11 // pred_check_branch
        %409 = sbr.rel (%p407) target = $region20
      $region19: #{eeg_inception_mi_forward.1} parent=11 // pred_region
        _
      $region20: #{eeg_inception_mi_forward.1} parent=11 // pred_fallthru
        _
      // Predicated region
      $region21: #{eeg_inception_mi_forward.1} parent=11 // pred_check
        %p410 = pneg %p111
      $region22: #{eeg_inception_mi_forward.1} parent=11 // pred_check_branch
        %412 = sbr.rel (%p410) target = $region24
      $region23: #{eeg_inception_mi_forward.1} parent=11 // pred_region
        _
      $region24: #{eeg_inception_mi_forward.1} parent=11 // pred_fallthru
        _
      // Predicated region
      $region25: #{eeg_inception_mi_forward.1} parent=11 // pred_check
        %p413 = pneg %p132
      $region26: #{eeg_inception_mi_forward.1} parent=11 // pred_check_branch
        %415 = sbr.rel (%p413) target = $region28
      $region27: #{eeg_inception_mi_forward.1} parent=11 // pred_region
        _
      $region28: #{eeg_inception_mi_forward.1} parent=11 // pred_fallthru
        _
      // Predicated region
      $region29: #{eeg_inception_mi_forward.1} parent=11 // pred_check
        %p416 = pneg %p153
      $region30: #{eeg_inception_mi_forward.1} parent=11 // pred_check_branch
        %418 = sbr.rel (%p416) target = $region32
      $region31: #{eeg_inception_mi_forward.1} parent=11 // pred_region
        _
      $region32: #{eeg_inception_mi_forward.1} parent=11 // pred_fallthru
        _
      // Predicated region
      $region33: #{eeg_inception_mi_forward.1} parent=11 // pred_check
        %p419 = pneg %p174
      $region34: #{eeg_inception_mi_forward.1} parent=11 // pred_check_branch
        %421 = sbr.rel (%p419) target = $region36
      $region35: #{eeg_inception_mi_forward.1} parent=11 // pred_region
        _
      $region36: #{eeg_inception_mi_forward.1} parent=11 // pred_fallthru
        _
      // Predicated region
      $region37: #{eeg_inception_mi_forward.1} parent=11 // pred_check
        %p422 = pneg %p195
      $region38: #{eeg_inception_mi_forward.1} parent=11 // pred_check_branch
        %424 = sbr.rel (%p422) target = $region40
      $region39: #{eeg_inception_mi_forward.1} parent=11 // pred_region
        _
      $region40: #{eeg_inception_mi_forward.1} parent=11 // pred_fallthru
        _
      // Predicated region
      $region41: #{eeg_inception_mi_forward.1} parent=11 // pred_check
        %p425 = pneg %p216
      $region42: #{eeg_inception_mi_forward.1} parent=11 // pred_check_branch
        %427 = sbr.rel (%p425) target = $region44
      $region43: #{eeg_inception_mi_forward.1} parent=11 // pred_region
        _
      $region44: #{eeg_inception_mi_forward.1} parent=11 // pred_fallthru
        _
      // Predicated region
      $region45: #{eeg_inception_mi_forward.1} parent=11 // pred_check
        %p428 = pneg %p237
      $region46: #{eeg_inception_mi_forward.1} parent=11 // pred_check_branch
        %430 = sbr.rel (%p428) target = $region48
      $region47: #{eeg_inception_mi_forward.1} parent=11 // pred_region
        _
      $region48: #{eeg_inception_mi_forward.1} parent=11 // pred_fallthru
        _
      // Predicated region
      $region49: #{eeg_inception_mi_forward.1} parent=11 // pred_check
        %p431 = pneg %p258
      $region50: #{eeg_inception_mi_forward.1} parent=11 // pred_check_branch
        %433 = sbr.rel (%p431) target = $region52
      $region51: #{eeg_inception_mi_forward.1} parent=11 // pred_region
        _
      $region52: #{eeg_inception_mi_forward.1} parent=11 // pred_fallthru
        _
      // Predicated region
      $region53: #{eeg_inception_mi_forward.1} parent=11 // pred_check
        %p434 = pneg %p279
      $region54: #{eeg_inception_mi_forward.1} parent=11 // pred_check_branch
        %436 = sbr.rel (%p434) target = $region56
      $region55: #{eeg_inception_mi_forward.1} parent=11 // pred_region
        _
      $region56: #{eeg_inception_mi_forward.1} parent=11 // pred_fallthru
        _
      // Predicated region
      $region57: #{eeg_inception_mi_forward.1} parent=11 // pred_check
        %p437 = pneg %p300
      $region58: #{eeg_inception_mi_forward.1} parent=11 // pred_check_branch
        %439 = sbr.rel (%p437) target = $region60
      $region59: #{eeg_inception_mi_forward.1} parent=11 // pred_region
        _
      $region60: #{eeg_inception_mi_forward.1} parent=11 // pred_fallthru
        _
      // Predicated region
      $region61: #{eeg_inception_mi_forward.1} parent=11 // pred_check
        %p440 = pneg %p321
      $region62: #{eeg_inception_mi_forward.1} parent=11 // pred_check_branch
        %442 = sbr.rel (%p440) target = $region64
      $region63: #{eeg_inception_mi_forward.1} parent=11 // pred_region
        _
      $region64: #{eeg_inception_mi_forward.1} parent=11 // pred_fallthru
        _
      // Predicated region
      $region65: #{eeg_inception_mi_forward.1} parent=11 // pred_check
        %p443 = pneg %p342
      $region66: #{eeg_inception_mi_forward.1} parent=11 // pred_check_branch
        %445 = sbr.rel (%p443) target = $region68
      $region67: #{eeg_inception_mi_forward.1} parent=11 // pred_region
        _
      $region68: #{eeg_inception_mi_forward.1} parent=11 // pred_fallthru
        _
      // Predicated region
      $region69: #{eeg_inception_mi_forward.1} parent=11 // pred_check
        %p446 = pneg %p363
      $region70: #{eeg_inception_mi_forward.1} parent=11 // pred_check_branch
        %448 = sbr.rel (%p446) target = $region72
      $region71: #{eeg_inception_mi_forward.1} parent=11 // pred_region
        _
      $region72: #{eeg_inception_mi_forward.1} parent=11 // pred_fallthru
        _
    $region12: #{eeg_inception_mi_forward.1} parent=5 // pred_fallthru
      _
    %p449 = scmp.lt.s32.totalorder %s22, 2
    // Predicated region
    $region73: #{eeg_inception_mi_forward.1} parent=5 // pred_check
      %p450 = pneg %p449
    $region74: #{eeg_inception_mi_forward.1} parent=5 // pred_check_branch
      %452 = sbr.rel (%p450) target = $region76
    $region75: #{eeg_inception_mi_forward.1} parent=5 // pred_region
      // Predicated region
      $region77: #{eeg_inception_mi_forward.1} parent=75 // pred_check
        %p453 = pneg %p42
      $region78: #{eeg_inception_mi_forward.1} parent=75 // pred_check_branch
        %455 = sbr.rel (%p453) target = $region80
      $region79: #{eeg_inception_mi_forward.1} parent=75 // pred_region
        %p456 = scmp.lt.s32.totalorder %s22, 1
        %s457 = scalar_select %p456, %s22, 1
        %s458 = smul.addr %s457, 4
        %s459 = scalar_lea.vmem %s0, %s458
      $region80: #{eeg_inception_mi_forward.1} parent=75 // pred_fallthru
        _
    $region76: #{eeg_inception_mi_forward.1} parent=5 // pred_fallthru
      _
    %p460 = scmp.le.s32.totalorder 1, %s22
    %p461 = scmp.lt.s32.totalorder %s22, 3
    %p462 = pnand %p460, %p461
    %p463 = pneg %p462
    // Predicated region
    $region81: #{eeg_inception_mi_forward.1} parent=5 // pred_check
      _
    $region82: #{eeg_inception_mi_forward.1} parent=5 // pred_check_branch
      %465 = sbr.rel (%p462) target = $region84
    $region83: #{eeg_inception_mi_forward.1} parent=5 // pred_region
      %s466 = ssub.s32 %s22, 1
      %p467 = scmp.lt.s32.totalorder %s27, 1
      %s468 = scalar_select %p467, %s27, 1
      %s469 = smul.addr %s468, 4
      %s470 = scalar_lea.vmem %s0, %s469
      %p471 = pneg %p48
      %p472 = pneg %p45
      %p473 = pneg %p69
      %p474 = pneg %p66
      %p475 = pneg %p90
      %p476 = pneg %p87
      %p477 = pneg %p111
      %p478 = pneg %p108
      %p479 = pneg %p132
      %p480 = pneg %p129
      %p481 = pneg %p153
      %p482 = pneg %p150
      %p483 = pneg %p174
      %p484 = pneg %p171
      %p485 = pneg %p195
      %p486 = pneg %p192
      %p487 = pneg %p216
      %p488 = pneg %p213
      %p489 = pneg %p237
      %p490 = pneg %p234
      %p491 = pneg %p258
      %p492 = pneg %p255
      %p493 = pneg %p279
      %p494 = pneg %p276
      %p495 = pneg %p300
      %p496 = pneg %p297
      %p497 = pneg %p321
      %p498 = pneg %p318
      %p499 = pneg %p342
      %p500 = pneg %p339
      %p501 = pneg %p363
      %p502 = pneg %p360
      %p503 = pneg %p389
      %p504 = pneg %p386
      %p505 = scmp.lt.s32.totalorder %s27, 1
      %s506 = scalar_select %p505, %s27, 1
      %s507 = smul.addr %s506, 4
      %s508 = scalar_lea.vmem %s16, %s507
      %p509 = scmp.lt.s32.totalorder %s27, 1
      %s510 = scalar_select %p509, %s27, 1
      %s511 = smul.addr %s510, 4
      %s512 = scalar_lea.vmem %s0, %s511
      %p513 = scmp.lt.s32.totalorder %s27, 1
      %s514 = scalar_select %p513, %s27, 1
      %s515 = smul.addr %s514, 4
      %s516 = scalar_lea.vmem %s16, %s515
      %v518 = vld [vmem:[%s1] sm:$0xff]
      %v519 = vld [vmem:[%s1 + $0x8] sm:$0xff]
      %v520 = vld [vmem:[%s1 + $0x10] sm:$0xff]
      %v521 = vld [vmem:[%s1 + $0x18] sm:$0xff]
      %v522 = vld [vmem:[%s1 + $0x20] sm:$0xff]
      %v523 = vld [vmem:[%s1 + $0x28] sm:$0xff]
      %v524 = vld [vmem:[%s1 + $0x30] sm:$0xff]
      %v525 = vld [vmem:[%s1 + $0x38] sm:$0xff]
      %v526 = vld [vmem:[%s1 + $0x40] sm:$0xff]
      %v527 = vld [vmem:[%s1 + $0x48] sm:$0xff]
      %v528 = vld [vmem:[%s1 + $0x50] sm:$0xff]
      %v529 = vld [vmem:[%s1 + $0x58] sm:$0xff]
      %v530 = vld [vmem:[%s1 + $0x60] sm:$0xff]
      %v531 = vld [vmem:[%s1 + $0x68] sm:$0xff]
      %v532 = vld [vmem:[%s1 + $0x70] sm:$0xff]
      %v533 = vld [vmem:[%s2] sm:$0x1f]
      %v534 = vld [vmem:[%s512] sm:$0xf]
      %v535 = vld [vmem:[%s4] sm:$0xf]
      %v536 = vld [vmem:[%s4 + $0x4] sm:$0xf]
      %v537 = vld [vmem:[%s4 + $0x8] sm:$0xf]
      %v538 = vld [vmem:[%s4 + $0xc] sm:$0xf]
      %v539 = vpack.c.bf16 %v534, %v534
      %v540 = vld [vmem:[%s5] sm:$0xff]
      %v541 = vld [vmem:[%s5 + $0x8] sm:$0xff]
      %v542 = vld [vmem:[%s5 + $0x10] sm:$0xff]
      %v543 = vld [vmem:[%s5 + $0x18] sm:$0xff]
      %545 = vset.pattern.permute.xlu0 0
      %546 = vperm.xlu0 %545, %v540
      %v547 = vpop.permute.xlu0 %546
      %550 = vset.pattern.permute.xlu0 0
      %551 = vperm.xlu0 %550, %v541
      %v552 = vpop.permute.xlu0 %551
      %555 = vset.pattern.permute.xlu0 0
      %556 = vperm.xlu0 %555, %v542
      %v557 = vpop.permute.xlu0 %556
      %560 = vset.pattern.permute.xlu0 0
      %561 = vperm.xlu0 %560, %v543
      %v562 = vpop.permute.xlu0 %561
      %v568 = vunpack.c.l.b16 %v535
      %v569 = vunpack.c.l.b16 %v536
      %v570 = vunpack.c.l.b16 %v537
      %v571 = vunpack.c.l.b16 %v538
      %v572 = vpack.c.b16 %v569, %v568
      %v573 = vpack.c.b16 %v571, %v570
      %vm574 = vcmask 31744
      %v576 = vsel %vm574, %v572, 0
      %v579 = vsel %vm574, %v573, 0
      %vm581 = vcmask 1041408
      %v583 = vsel %vm581, %v539, 0
      %585 = vmatpush.bf16.msra.mxu0 0
      %586 = vmatpush.bf16.msra.mxu0 0
      %587 = vmatpush.bf16.msra.mxu0 0
      %588 = vmatpush.bf16.msra.mxu0 0
      %589 = vmatpush.bf16.msra.mxu0 0
      %590 = vmatpush.bf16.msra.mxu0 0
      %591 = vmatpush.bf16.msra.mxu0 0
      %592 = vmatpush.bf16.msra.mxu0 %v583
      %593 = vmatmul.bf16.gmra.mxu0 %v576
      %v594 = vpop.f32.mrf.mxu0
      %v595 = vadd.f32 %v547, %v594
      %v596 = vpop.f32.mrf.mxu0
      %v597 = vadd.f32 %v552, %v596
      %598 = vmatmul.bf16.gmra.mxu0 %v579
      %v599 = vpop.f32.mrf.mxu0
      %v600 = vadd.f32 %v557, %v599
      %v601 = vpop.f32.mrf.mxu0
      %v602 = vadd.f32 %v562, %v601
      %603 = vdwg.mxu0
      %v604 = vmax.f32 %v595, 0.0
      %v605 = vmax.f32 %v597, 0.0
      %v606 = vmax.f32 %v600, 0.0
      %v607 = vld [vmem:[%s6] sm:$0xf]
      %v608 = vld [vmem:[%s6 + $0x4] sm:$0xf]
      %v609 = vld [vmem:[%s6 + $0x8] sm:$0xf]
      %v610 = vld [vmem:[%s7] sm:$0xff]
      %v611 = vld [vmem:[%s7 + $0x8] sm:$0xff]
      %v612 = vld [vmem:[%s7 + $0x10] sm:$0xff]
      %613 = vrot.lane.b32.xlu0 %v602, 7
      %v614 = vpop.permute.xlu0 %613
      %615 = vrot.lane.b32.xlu0 %v602, 6
      %v616 = vpop.permute.xlu0 %615
      %617 = vrot.lane.b32.xlu0 %v602, 5
      %v618 = vpop.permute.xlu0 %617
      %619 = vrot.lane.b32.xlu0 %v602, 4
      %v620 = vpop.permute.xlu0 %619
      %621 = vrot.lane.b32.xlu0 %v602, 3
      %v622 = vpop.permute.xlu0 %621
      %623 = vrot.lane.b32.xlu0 %v602, 2
      %v624 = vpop.permute.xlu0 %623
      %625 = vrot.lane.b32.xlu0 %v602, 1
      %v626 = vpop.permute.xlu0 %625
      %627 = vrot.lane.b32.xlu0 %v602, 127
      %v628 = vpop.permute.xlu0 %627
      %629 = vrot.lane.b32.xlu0 %v602, 126
      %v630 = vpop.permute.xlu0 %629
      %631 = vrot.lane.b32.xlu0 %v602, 125
      %v632 = vpop.permute.xlu0 %631
      %633 = vrot.lane.b32.xlu0 %v602, 124
      %v634 = vpop.permute.xlu0 %633
      %635 = vrot.lane.b32.xlu0 %v602, 123
      %v636 = vpop.permute.xlu0 %635
      %637 = vrot.lane.b32.xlu0 %v602, 122
      %v638 = vpop.permute.xlu0 %637
      %639 = vrot.lane.b32.xlu0 %v602, 121
      %v640 = vpop.permute.xlu0 %639
      %v641 = vmul.f32 %v614, %v518
      %v642 = vmul.f32 %v616, %v519
      %v643 = vmul.f32 %v618, %v520
      %v644 = vmul.f32 %v620, %v521
      %v645 = vmul.f32 %v622, %v522
      %v646 = vmul.f32 %v624, %v523
      %v647 = vmul.f32 %v626, %v524
      %v648 = vmul.f32 %v602, %v525
      %v649 = vmul.f32 %v628, %v526
      %v650 = vmul.f32 %v630, %v527
      %v651 = vmul.f32 %v632, %v528
      %v652 = vmul.f32 %v634, %v529
      %v653 = vmul.f32 %v636, %v530
      %v654 = vmul.f32 %v638, %v531
      %v655 = vmul.f32 %v640, %v532
      %656 = vrot.lane.b32.xlu0 %v534, 2
      %v657 = vpop.permute.xlu0 %656
      %v658 = vperm.slane %v533, 0
      %v659 = vadd.f32 %v657, %v658
      %v660 = vmax.f32 %v534, %v659
      %661 = vrot.lane.b32.xlu0 %v534, 1
      %v662 = vpop.permute.xlu0 %661
      %v663 = vperm.slane %v533, 1
      %v664 = vadd.f32 %v662, %v663
      %v665 = vmax.f32 %v660, %v664
      %666 = vrot.lane.b32.xlu0 %v534, 127
      %v667 = vpop.permute.xlu0 %666
      %v668 = vperm.slane %v533, 3
      %v669 = vadd.f32 %v667, %v668
      %v670 = vmax.f32 %v665, %v669
      %671 = vrot.lane.b32.xlu0 %v534, 126
      %v672 = vpop.permute.xlu0 %671
      %v673 = vperm.slane %v533, 4
      %v674 = vadd.f32 %v672, %v673
      %v675 = vmax.f32 %v670, %v674
      %v676 = vpack.c.bf16 %v642, %v641
      %v677 = vpack.c.bf16 %v644, %v643
      %v678 = vpack.c.bf16 %v646, %v645
      %v679 = vpack.c.bf16 %v648, %v647
      %v680 = vpack.c.bf16 %v650, %v649
      %v681 = vpack.c.bf16 %v652, %v651
      %v682 = vpack.c.bf16 %v654, %v653
      %v683 = vpack.c.bf16 %v675, %v655
      %685 = vset.pattern.permute.xlu0 0
      %686 = vperm.xlu0 %685, %v610
      %v687 = vpop.permute.xlu0 %686
      %690 = vset.pattern.permute.xlu0 0
      %691 = vperm.xlu0 %690, %v611
      %v692 = vpop.permute.xlu0 %691
      %695 = vset.pattern.permute.xlu0 0
      %696 = vperm.xlu0 %695, %v612
      %v697 = vpop.permute.xlu0 %696
      %v702 = vunpack.c.l.b16 %v607
      %v703 = vunpack.c.l.b16 %v608
      %v704 = vunpack.c.l.b16 %v609
      %v705 = vpack.c.b16 %v703, %v702
      %v706 = vpack.c.b16 %v704, %v704
      %vm707 = vcmask 1014784
      %v709 = vsel %vm707, %v705, 0
      %v712 = vsel %vm707, %v706, 0
      %vm714 = vcmask 1045504
      %v716 = vsel %vm714, %v683, 0
      %718 = vmatpush.bf16.msra.mxu0 %v716
      %719 = vmatpush.bf16.msra.mxu0 %v682
      %720 = vmatpush.bf16.msra.mxu0 %v681
      %721 = vmatpush.bf16.msra.mxu0 %v680
      %722 = vmatpush.bf16.msra.mxu0 %v679
      %723 = vmatpush.bf16.msra.mxu0 %v678
      %724 = vmatpush.bf16.msra.mxu0 %v677
      %725 = vmatpush.bf16.msra.mxu0 %v676
      %726 = vmatmul.bf16.gmra.mxu0 %v709
      %v727 = vpop.f32.mrf.mxu0
      %v728 = vadd.f32 %v687, %v727
      %v729 = vpop.f32.mrf.mxu0
      %v730 = vadd.f32 %v692, %v729
      %731 = vmatmul.bf16.gmra.mxu0 %v712
      %v732 = vpop.f32.mrf.mxu0
      %v733 = vadd.f32 %v697, %v732
      %v734 = vpop.f32.mrf.mxu0
      %735 = vdwg.mxu0
      %v736 = vmax.f32 %v728, 0.0
      %v737 = vmax.f32 %v730, 0.0
      %v738 = vmax.f32 %v733, 0.0
      %v739 = vld [vmem:[%s8] sm:$0xf]
      %v740 = vpack.c.bf16 %v737, %v736
      %v741 = vpack.c.bf16 %v738, %v738
      %v742 = vld [vmem:[%s9] sm:$0xff]
      %744 = vset.pattern.permute.xlu0 0
      %745 = vperm.xlu0 %744, %v742
      %v746 = vpop.permute.xlu0 %745
      %vm748 = vcmask 195584
      %v750 = vsel %vm748, %v739, 0
      %vm752 = vcmask 1043456
      %v754 = vsel %vm752, %v741, 0
      %756 = vmatpush.bf16.msra.mxu0 0
      %757 = vmatpush.bf16.msra.mxu0 0
      %758 = vmatpush.bf16.msra.mxu0 0
      %759 = vmatpush.bf16.msra.mxu0 0
      %760 = vmatpush.bf16.msra.mxu0 0
      %761 = vmatpush.bf16.msra.mxu0 0
      %762 = vmatpush.bf16.msra.mxu0 %v754
      %763 = vmatpush.bf16.msra.mxu0 %v740
      %764 = vmatmul.bf16.gmra.mxu0 %v750
      %v765 = vpop.f32.mrf.mxu0
      %v766 = vadd.f32 %v746, %v765
      %v767 = vpop.f32.mrf.mxu0
      %768 = vdwg.mxu0
      %v769 = vld [vmem:[%s10] sm:$0xff]
      %v770 = vld [vmem:[%s10 + $0x8] sm:$0xff]
      %v771 = vld [vmem:[%s10 + $0x10] sm:$0xff]
      %v772 = vld [vmem:[%s11] sm:$0xff]
      %v773 = vld [vmem:[%s11 + $0x8] sm:$0xff]
      %v774 = vld [vmem:[%s11 + $0x10] sm:$0xff]
      %775 = vrot.lane.b32.xlu0 %v766, 7
      %v776 = vpop.permute.xlu0 %775
      %777 = vrot.lane.b32.xlu0 %v766, 6
      %v778 = vpop.permute.xlu0 %777
      %779 = vrot.lane.b32.xlu0 %v766, 5
      %v780 = vpop.permute.xlu0 %779
      %781 = vrot.lane.b32.xlu0 %v766, 4
      %v782 = vpop.permute.xlu0 %781
      %783 = vrot.lane.b32.xlu0 %v766, 3
      %v784 = vpop.permute.xlu0 %783
      %785 = vrot.lane.b32.xlu0 %v766, 2
      %v786 = vpop.permute.xlu0 %785
      %787 = vrot.lane.b32.xlu0 %v766, 1
      %v788 = vpop.permute.xlu0 %787
      %789 = vrot.lane.b32.xlu0 %v766, 127
      %v790 = vpop.permute.xlu0 %789
      %791 = vrot.lane.b32.xlu0 %v766, 126
      %v792 = vpop.permute.xlu0 %791
      %793 = vrot.lane.b32.xlu0 %v766, 125
      %v794 = vpop.permute.xlu0 %793
      %795 = vrot.lane.b32.xlu0 %v766, 124
      %v796 = vpop.permute.xlu0 %795
      %797 = vrot.lane.b32.xlu0 %v766, 123
      %v798 = vpop.permute.xlu0 %797
      %799 = vrot.lane.b32.xlu0 %v766, 122
      %v800 = vpop.permute.xlu0 %799
      %801 = vrot.lane.b32.xlu0 %v766, 121
      %v802 = vpop.permute.xlu0 %801
      %v803 = vmul.f32 %v776, %v518
      %v804 = vmul.f32 %v778, %v519
      %v805 = vmul.f32 %v780, %v520
      %v806 = vmul.f32 %v782, %v521
      %v807 = vmul.f32 %v784, %v522
      %v808 = vmul.f32 %v786, %v523
      %v809 = vmul.f32 %v788, %v524
      %v810 = vmul.f32 %v766, %v525
      %v811 = vmul.f32 %v790, %v526
      %v812 = vmul.f32 %v792, %v527
      %v813 = vmul.f32 %v794, %v528
      %v814 = vmul.f32 %v796, %v529
      %v815 = vmul.f32 %v798, %v530
      %v816 = vmul.f32 %v800, %v531
      %v817 = vmul.f32 %v802, %v532
      %818 = vrot.lane.b32.xlu0 %v736, 2
      %v819 = vpop.permute.xlu0 %818
      %820 = vrot.lane.b32.xlu0 %v737, 2
      %v821 = vpop.permute.xlu0 %820
      %822 = vrot.lane.b32.xlu0 %v738, 2
      %v823 = vpop.permute.xlu0 %822
      %v824 = vadd.f32 %v819, %v658
      %v825 = vadd.f32 %v821, %v658
      %v826 = vadd.f32 %v823, %v658
      %v827 = vmax.f32 %v736, %v824
      %v828 = vmax.f32 %v737, %v825
      %v829 = vmax.f32 %v738, %v826
      %830 = vrot.lane.b32.xlu0 %v736, 1
      %v831 = vpop.permute.xlu0 %830
      %832 = vrot.lane.b32.xlu0 %v737, 1
      %v833 = vpop.permute.xlu0 %832
      %834 = vrot.lane.b32.xlu0 %v738, 1
      %v835 = vpop.permute.xlu0 %834
      %v836 = vadd.f32 %v831, %v663
      %v837 = vadd.f32 %v833, %v663
      %v838 = vadd.f32 %v835, %v663
      %v839 = vmax.f32 %v827, %v836
      %v840 = vmax.f32 %v828, %v837
      %v841 = vmax.f32 %v829, %v838
      %842 = vrot.lane.b32.xlu0 %v736, 127
      %v843 = vpop.permute.xlu0 %842
      %844 = vrot.lane.b32.xlu0 %v737, 127
      %v845 = vpop.permute.xlu0 %844
      %846 = vrot.lane.b32.xlu0 %v738, 127
      %v847 = vpop.permute.xlu0 %846
      %v848 = vadd.f32 %v843, %v668
      %v849 = vadd.f32 %v845, %v668
      %v850 = vadd.f32 %v847, %v668
      %v851 = vmax.f32 %v839, %v848
      %v852 = vmax.f32 %v840, %v849
      %v853 = vmax.f32 %v841, %v850
      %854 = vrot.lane.b32.xlu0 %v736, 126
      %v855 = vpop.permute.xlu0 %854
      %856 = vrot.lane.b32.xlu0 %v737, 126
      %v857 = vpop.permute.xlu0 %856
      %858 = vrot.lane.b32.xlu0 %v738, 126
      %v859 = vpop.permute.xlu0 %858
      %v860 = vadd.f32 %v855, %v673
      %v861 = vadd.f32 %v857, %v673
      %v862 = vadd.f32 %v859, %v673
      %v863 = vmax.f32 %v851, %v860
      %v864 = vmax.f32 %v852, %v861
      %v865 = vmax.f32 %v853, %v862
      %v866 = vpack.c.bf16 %v804, %v803
      %v867 = vpack.c.bf16 %v806, %v805
      %v868 = vpack.c.bf16 %v808, %v807
      %v869 = vpack.c.bf16 %v810, %v809
      %v870 = vpack.c.bf16 %v812, %v811
      %v871 = vpack.c.bf16 %v814, %v813
      %v872 = vpack.c.bf16 %v816, %v815
      %v873 = vpack.c.bf16 %v863, %v817
      %v874 = vpack.c.bf16 %v865, %v864
      %876 = vset.pattern.permute.xlu0 0
      %877 = vperm.xlu0 %876, %v772
      %v878 = vpop.permute.xlu0 %877
      %881 = vset.pattern.permute.xlu0 0
      %882 = vperm.xlu0 %881, %v773
      %v883 = vpop.permute.xlu0 %882
      %886 = vset.pattern.permute.xlu0 0
      %887 = vperm.xlu0 %886, %v774
      %v888 = vpop.permute.xlu0 %887
      %v893 = vunpack.c.l.b16 %v769
      %v894 = vunpack.c.h.b16 %v769
      %v895 = vunpack.c.l.b16 %v770
      %v896 = vunpack.c.h.b16 %v770
      %v897 = vunpack.c.l.b16 %v771
      %v898 = vunpack.c.h.b16 %v771
      %v899 = vpack.c.b16 %v895, %v893
      %v900 = vpack.c.b16 %v896, %v894
      %v901 = vpack.c.b16 %v897, %v897
      %v902 = vpack.c.b16 %v898, %v898
      %vm905 = vcmask 130048
      %v907 = vsel %vm905, %v900, 0
      %v910 = vsel %vm905, %v902, 0
      %912 = vmatpush.bf16.msra.mxu0 %v873
      %913 = vmatpush.bf16.msra.mxu0 %v872
      %914 = vmatpush.bf16.msra.mxu0 %v871
      %915 = vmatpush.bf16.msra.mxu0 %v870
      %916 = vmatpush.bf16.msra.mxu0 %v869
      %917 = vmatpush.bf16.msra.mxu0 %v868
      %918 = vmatpush.bf16.msra.mxu0 %v867
      %919 = vmatpush.bf16.msra.mxu0 %v866
      %920 = vmatmul.bf16.gmra.mxu0 %v899
      %v921 = vpop.f32.mrf.mxu0
      %v922 = vadd.f32 %v878, %v921
      %v923 = vpop.f32.mrf.mxu0
      %v924 = vadd.f32 %v883, %v923
      %925 = vmatmul.bf16.gmra.mxu0 %v901
      %v926 = vpop.f32.mrf.mxu0
      %v927 = vadd.f32 %v888, %v926
      %v928 = vpop.f32.mrf.mxu0
      %929 = vdwg.mxu0
      %930 = vmatpush.bf16.msra.mxu0 0
      %931 = vmatpush.bf16.msra.mxu0 0
      %932 = vmatpush.bf16.msra.mxu0 0
      %933 = vmatpush.bf16.msra.mxu0 0
      %934 = vmatpush.bf16.msra.mxu0 0
      %935 = vmatpush.bf16.msra.mxu0 0
      %936 = vmatpush.bf16.msra.mxu0 0
      %937 = vmatpush.bf16.msra.mxu0 %v874
      %938 = vmatmul.bf16.gmra.mxu0 %v907
      %v939 = vpop.f32.mrf.mxu0
      %v940 = vadd.f32 %v922, %v939
      %v941 = vpop.f32.mrf.mxu0
      %v942 = vadd.f32 %v924, %v941
      %943 = vmatmul.bf16.gmra.mxu0 %v910
      %v944 = vpop.f32.mrf.mxu0
      %v945 = vadd.f32 %v927, %v944
      %v946 = vpop.f32.mrf.mxu0
      %947 = vdwg.mxu0
      %v948 = vmax.f32 %v940, 0.0
      %v949 = vmax.f32 %v942, 0.0
      %v950 = vmax.f32 %v945, 0.0
      %s951 = scalar_lea.vmem %s8, 4
      %v952 = vld [vmem:[%s951] sm:$0xf]
      %v953 = vpack.c.bf16 %v949, %v948
      %v954 = vpack.c.bf16 %v950, %v950
      %s955 = scalar_lea.vmem %s9, 8
      %v956 = vld [vmem:[%s955] sm:$0xff]
      %958 = vset.pattern.permute.xlu0 0
      %959 = vperm.xlu0 %958, %v956
      %v960 = vpop.permute.xlu0 %959
      %v963 = vsel %vm748, %v952, 0
      %v966 = vsel %vm752, %v954, 0
      %968 = vmatpush.bf16.msra.mxu0 0
      %969 = vmatpush.bf16.msra.mxu0 0
      %970 = vmatpush.bf16.msra.mxu0 0
      %971 = vmatpush.bf16.msra.mxu0 0
      %972 = vmatpush.bf16.msra.mxu0 0
      %973 = vmatpush.bf16.msra.mxu0 0
      %974 = vmatpush.bf16.msra.mxu0 %v966
      %975 = vmatpush.bf16.msra.mxu0 %v953
      %976 = vmatmul.bf16.gmra.mxu0 %v963
      %v977 = vpop.f32.mrf.mxu0
      %v978 = vadd.f32 %v960, %v977
      %v979 = vpop.f32.mrf.mxu0
      %980 = vdwg.mxu0
      %s981 = scalar_lea.vmem %s10, 24
      %v982 = vld [vmem:[%s981] sm:$0xff]
      %v983 = vld [vmem:[%s981 + $0x8] sm:$0xff]
      %v984 = vld [vmem:[%s981 + $0x10] sm:$0xff]
      %s985 = scalar_lea.vmem %s11, 24
      %v986 = vld [vmem:[%s985] sm:$0xff]
      %v987 = vld [vmem:[%s985 + $0x8] sm:$0xff]
      %v988 = vld [vmem:[%s985 + $0x10] sm:$0xff]
      %989 = vrot.lane.b32.xlu0 %v978, 7
      %v990 = vpop.permute.xlu0 %989
      %991 = vrot.lane.b32.xlu0 %v978, 6
      %v992 = vpop.permute.xlu0 %991
      %993 = vrot.lane.b32.xlu0 %v978, 5
      %v994 = vpop.permute.xlu0 %993
      %995 = vrot.lane.b32.xlu0 %v978, 4
      %v996 = vpop.permute.xlu0 %995
      %997 = vrot.lane.b32.xlu0 %v978, 3
      %v998 = vpop.permute.xlu0 %997
      %999 = vrot.lane.b32.xlu0 %v978, 2
      %v1000 = vpop.permute.xlu0 %999
      %1001 = vrot.lane.b32.xlu0 %v978, 1
      %v1002 = vpop.permute.xlu0 %1001
      %1003 = vrot.lane.b32.xlu0 %v978, 127
      %v1004 = vpop.permute.xlu0 %1003
      %1005 = vrot.lane.b32.xlu0 %v978, 126
      %v1006 = vpop.permute.xlu0 %1005
      %1007 = vrot.lane.b32.xlu0 %v978, 125
      %v1008 = vpop.permute.xlu0 %1007
      %1009 = vrot.lane.b32.xlu0 %v978, 124
      %v1010 = vpop.permute.xlu0 %1009
      %1011 = vrot.lane.b32.xlu0 %v978, 123
      %v1012 = vpop.permute.xlu0 %1011
      %1013 = vrot.lane.b32.xlu0 %v978, 122
      %v1014 = vpop.permute.xlu0 %1013
      %1015 = vrot.lane.b32.xlu0 %v978, 121
      %v1016 = vpop.permute.xlu0 %1015
      %v1017 = vmul.f32 %v990, %v518
      %v1018 = vmul.f32 %v992, %v519
      %v1019 = vmul.f32 %v994, %v520
      %v1020 = vmul.f32 %v996, %v521
      %v1021 = vmul.f32 %v998, %v522
      %v1022 = vmul.f32 %v1000, %v523
      %v1023 = vmul.f32 %v1002, %v524
      %v1024 = vmul.f32 %v978, %v525
      %v1025 = vmul.f32 %v1004, %v526
      %v1026 = vmul.f32 %v1006, %v527
      %v1027 = vmul.f32 %v1008, %v528
      %v1028 = vmul.f32 %v1010, %v529
      %v1029 = vmul.f32 %v1012, %v530
      %v1030 = vmul.f32 %v1014, %v531
      %v1031 = vmul.f32 %v1016, %v532
      %1032 = vrot.lane.b32.xlu0 %v948, 2
      %v1033 = vpop.permute.xlu0 %1032
      %1034 = vrot.lane.b32.xlu0 %v949, 2
      %v1035 = vpop.permute.xlu0 %1034
      %1036 = vrot.lane.b32.xlu0 %v950, 2
      %v1037 = vpop.permute.xlu0 %1036
      %v1038 = vadd.f32 %v1033, %v658
      %v1039 = vadd.f32 %v1035, %v658
      %v1040 = vadd.f32 %v1037, %v658
      %v1041 = vmax.f32 %v948, %v1038
      %v1042 = vmax.f32 %v949, %v1039
      %v1043 = vmax.f32 %v950, %v1040
      %1044 = vrot.lane.b32.xlu0 %v948, 1
      %v1045 = vpop.permute.xlu0 %1044
      %1046 = vrot.lane.b32.xlu0 %v949, 1
      %v1047 = vpop.permute.xlu0 %1046
      %1048 = vrot.lane.b32.xlu0 %v950, 1
      %v1049 = vpop.permute.xlu0 %1048
      %v1050 = vadd.f32 %v1045, %v663
      %v1051 = vadd.f32 %v1047, %v663
      %v1052 = vadd.f32 %v1049, %v663
      %v1053 = vmax.f32 %v1041, %v1050
      %v1054 = vmax.f32 %v1042, %v1051
      %v1055 = vmax.f32 %v1043, %v1052
      %1056 = vrot.lane.b32.xlu0 %v948, 127
      %v1057 = vpop.permute.xlu0 %1056
      %1058 = vrot.lane.b32.xlu0 %v949, 127
      %v1059 = vpop.permute.xlu0 %1058
      %1060 = vrot.lane.b32.xlu0 %v950, 127
      %v1061 = vpop.permute.xlu0 %1060
      %v1062 = vadd.f32 %v1057, %v668
      %v1063 = vadd.f32 %v1059, %v668
      %v1064 = vadd.f32 %v1061, %v668
      %v1065 = vmax.f32 %v1053, %v1062
      %v1066 = vmax.f32 %v1054, %v1063
      %v1067 = vmax.f32 %v1055, %v1064
      %1068 = vrot.lane.b32.xlu0 %v948, 126
      %v1069 = vpop.permute.xlu0 %1068
      %1070 = vrot.lane.b32.xlu0 %v949, 126
      %v1071 = vpop.permute.xlu0 %1070
      %1072 = vrot.lane.b32.xlu0 %v950, 126
      %v1073 = vpop.permute.xlu0 %1072
      %v1074 = vadd.f32 %v1069, %v673
      %v1075 = vadd.f32 %v1071, %v673
      %v1076 = vadd.f32 %v1073, %v673
      %v1077 = vmax.f32 %v1065, %v1074
      %v1078 = vmax.f32 %v1066, %v1075
      %v1079 = vmax.f32 %v1067, %v1076
      %v1080 = vpack.c.bf16 %v1018, %v1017
      %v1081 = vpack.c.bf16 %v1020, %v1019
      %v1082 = vpack.c.bf16 %v1022, %v1021
      %v1083 = vpack.c.bf16 %v1024, %v1023
      %v1084 = vpack.c.bf16 %v1026, %v1025
      %v1085 = vpack.c.bf16 %v1028, %v1027
      %v1086 = vpack.c.bf16 %v1030, %v1029
      %v1087 = vpack.c.bf16 %v1077, %v1031
      %v1088 = vpack.c.bf16 %v1079, %v1078
      %1090 = vset.pattern.permute.xlu0 0
      %1091 = vperm.xlu0 %1090, %v986
      %v1092 = vpop.permute.xlu0 %1091
      %1095 = vset.pattern.permute.xlu0 0
      %1096 = vperm.xlu0 %1095, %v987
      %v1097 = vpop.permute.xlu0 %1096
      %1100 = vset.pattern.permute.xlu0 0
      %1101 = vperm.xlu0 %1100, %v988
      %v1102 = vpop.permute.xlu0 %1101
      %v1107 = vunpack.c.l.b16 %v982
      %v1108 = vunpack.c.h.b16 %v982
      %v1109 = vunpack.c.l.b16 %v983
      %v1110 = vunpack.c.h.b16 %v983
      %v1111 = vunpack.c.l.b16 %v984
      %v1112 = vunpack.c.h.b16 %v984
      %v1113 = vpack.c.b16 %v1109, %v1107
      %v1114 = vpack.c.b16 %v1110, %v1108
      %v1115 = vpack.c.b16 %v1111, %v1111
      %v1116 = vpack.c.b16 %v1112, %v1112
      %v1120 = vsel %vm905, %v1114, 0
      %v1123 = vsel %vm905, %v1116, 0
      %1125 = vmatpush.bf16.msra.mxu0 %v1087
      %1126 = vmatpush.bf16.msra.mxu0 %v1086
      %1127 = vmatpush.bf16.msra.mxu0 %v1085
      %1128 = vmatpush.bf16.msra.mxu0 %v1084
      %1129 = vmatpush.bf16.msra.mxu0 %v1083
      %1130 = vmatpush.bf16.msra.mxu0 %v1082
      %1131 = vmatpush.bf16.msra.mxu0 %v1081
      %1132 = vmatpush.bf16.msra.mxu0 %v1080
      %1133 = vmatmul.bf16.gmra.mxu0 %v1113
      %v1134 = vpop.f32.mrf.mxu0
      %v1135 = vadd.f32 %v1092, %v1134
      %v1136 = vpop.f32.mrf.mxu0
      %v1137 = vadd.f32 %v1097, %v1136
      %1138 = vmatmul.bf16.gmra.mxu0 %v1115
      %v1139 = vpop.f32.mrf.mxu0
      %v1140 = vadd.f32 %v1102, %v1139
      %v1141 = vpop.f32.mrf.mxu0
      %1142 = vdwg.mxu0
      %1143 = vmatpush.bf16.msra.mxu0 0
      %1144 = vmatpush.bf16.msra.mxu0 0
      %1145 = vmatpush.bf16.msra.mxu0 0
      %1146 = vmatpush.bf16.msra.mxu0 0
      %1147 = vmatpush.bf16.msra.mxu0 0
      %1148 = vmatpush.bf16.msra.mxu0 0
      %1149 = vmatpush.bf16.msra.mxu0 0
      %1150 = vmatpush.bf16.msra.mxu0 %v1088
      %1151 = vmatmul.bf16.gmra.mxu0 %v1120
      %v1152 = vpop.f32.mrf.mxu0
      %v1153 = vadd.f32 %v1135, %v1152
      %v1154 = vpop.f32.mrf.mxu0
      %v1155 = vadd.f32 %v1137, %v1154
      %1156 = vmatmul.bf16.gmra.mxu0 %v1123
      %v1157 = vpop.f32.mrf.mxu0
      %v1158 = vadd.f32 %v1140, %v1157
      %v1159 = vpop.f32.mrf.mxu0
      %1160 = vdwg.mxu0
      %v1161 = vmax.f32 %v1153, 0.0
      %v1162 = vmax.f32 %v1155, 0.0
      %v1163 = vmax.f32 %v1158, 0.0
      %v1164 = vadd.f32 %v1161, %v604
      %v1165 = vadd.f32 %v1162, %v605
      %v1166 = vadd.f32 %v1163, %v606
      %v1167 = vld [vmem:[%s12] sm:$0xf]
      %v1168 = vld [vmem:[%s12 + $0x4] sm:$0xf]
      %v1169 = vld [vmem:[%s12 + $0x8] sm:$0xf]
      %v1170 = vld [vmem:[%s12 + $0xc] sm:$0xf]
      %v1171 = vpack.c.bf16 %v1165, %v1164
      %v1172 = vpack.c.bf16 %v1166, %v1166
      %v1173 = vld [vmem:[%s13] sm:$0xff]
      %v1174 = vld [vmem:[%s13 + $0x8] sm:$0xff]
      %v1175 = vld [vmem:[%s13 + $0x10] sm:$0xff]
      %v1176 = vld [vmem:[%s13 + $0x18] sm:$0xff]
      %1178 = vset.pattern.permute.xlu0 0
      %1179 = vperm.xlu0 %1178, %v1173
      %v1180 = vpop.permute.xlu0 %1179
      %1183 = vset.pattern.permute.xlu0 0
      %1184 = vperm.xlu0 %1183, %v1174
      %v1185 = vpop.permute.xlu0 %1184
      %1188 = vset.pattern.permute.xlu0 0
      %1189 = vperm.xlu0 %1188, %v1175
      %v1190 = vpop.permute.xlu0 %1189
      %1193 = vset.pattern.permute.xlu0 0
      %1194 = vperm.xlu0 %1193, %v1176
      %v1195 = vpop.permute.xlu0 %1194
      %v1201 = vunpack.c.l.b16 %v1167
      %v1202 = vunpack.c.l.b16 %v1168
      %v1203 = vunpack.c.l.b16 %v1169
      %v1204 = vunpack.c.l.b16 %v1170
      %v1205 = vpack.c.b16 %v1202, %v1201
      %v1206 = vpack.c.b16 %v1204, %v1203
      %v1208 = vsel %vm748, %v1205, 0
      %v1211 = vsel %vm748, %v1206, 0
      %v1214 = vsel %vm752, %v1172, 0
      %1216 = vmatpush.bf16.msra.mxu0 0
      %1217 = vmatpush.bf16.msra.mxu0 0
      %1218 = vmatpush.bf16.msra.mxu0 0
      %1219 = vmatpush.bf16.msra.mxu0 0
      %1220 = vmatpush.bf16.msra.mxu0 0
      %1221 = vmatpush.bf16.msra.mxu0 0
      %1222 = vmatpush.bf16.msra.mxu0 %v1214
      %1223 = vmatpush.bf16.msra.mxu0 %v1171
      %1224 = vmatmul.bf16.gmra.mxu0 %v1208
      %v1225 = vpop.f32.mrf.mxu0
      %v1226 = vadd.f32 %v1180, %v1225
      %v1227 = vpop.f32.mrf.mxu0
      %v1228 = vadd.f32 %v1185, %v1227
      %1229 = vmatmul.bf16.gmra.mxu0 %v1211
      %v1230 = vpop.f32.mrf.mxu0
      %v1231 = vadd.f32 %v1190, %v1230
      %v1232 = vpop.f32.mrf.mxu0
      %v1233 = vadd.f32 %v1195, %v1232
      %1234 = vdwg.mxu0
      %v1235 = vmax.f32 %v1226, 0.0
      %v1236 = vmax.f32 %v1228, 0.0
      %v1237 = vmax.f32 %v1231, 0.0
      %s1238 = scalar_lea.vmem %s10, 48
      %v1239 = vld [vmem:[%s1238] sm:$0xff]
      %v1240 = vld [vmem:[%s1238 + $0x8] sm:$0xff]
      %v1241 = vld [vmem:[%s1238 + $0x10] sm:$0xff]
      %s1242 = scalar_lea.vmem %s11, 48
      %v1243 = vld [vmem:[%s1242] sm:$0xff]
      %v1244 = vld [vmem:[%s1242 + $0x8] sm:$0xff]
      %v1245 = vld [vmem:[%s1242 + $0x10] sm:$0xff]
      %1246 = vrot.lane.b32.xlu0 %v1233, 7
      %v1247 = vpop.permute.xlu0 %1246
      %1248 = vrot.lane.b32.xlu0 %v1233, 6
      %v1249 = vpop.permute.xlu0 %1248
      %1250 = vrot.lane.b32.xlu0 %v1233, 5
      %v1251 = vpop.permute.xlu0 %1250
      %1252 = vrot.lane.b32.xlu0 %v1233, 4
      %v1253 = vpop.permute.xlu0 %1252
      %1254 = vrot.lane.b32.xlu0 %v1233, 3
      %v1255 = vpop.permute.xlu0 %1254
      %1256 = vrot.lane.b32.xlu0 %v1233, 2
      %v1257 = vpop.permute.xlu0 %1256
      %1258 = vrot.lane.b32.xlu0 %v1233, 1
      %v1259 = vpop.permute.xlu0 %1258
      %1260 = vrot.lane.b32.xlu0 %v1233, 127
      %v1261 = vpop.permute.xlu0 %1260
      %1262 = vrot.lane.b32.xlu0 %v1233, 126
      %v1263 = vpop.permute.xlu0 %1262
      %1264 = vrot.lane.b32.xlu0 %v1233, 125
      %v1265 = vpop.permute.xlu0 %1264
      %1266 = vrot.lane.b32.xlu0 %v1233, 124
      %v1267 = vpop.permute.xlu0 %1266
      %1268 = vrot.lane.b32.xlu0 %v1233, 123
      %v1269 = vpop.permute.xlu0 %1268
      %1270 = vrot.lane.b32.xlu0 %v1233, 122
      %v1271 = vpop.permute.xlu0 %1270
      %1272 = vrot.lane.b32.xlu0 %v1233, 121
      %v1273 = vpop.permute.xlu0 %1272
      %v1274 = vmul.f32 %v1247, %v518
      %v1275 = vmul.f32 %v1249, %v519
      %v1276 = vmul.f32 %v1251, %v520
      %v1277 = vmul.f32 %v1253, %v521
      %v1278 = vmul.f32 %v1255, %v522
      %v1279 = vmul.f32 %v1257, %v523
      %v1280 = vmul.f32 %v1259, %v524
      %v1281 = vmul.f32 %v1233, %v525
      %v1282 = vmul.f32 %v1261, %v526
      %v1283 = vmul.f32 %v1263, %v527
      %v1284 = vmul.f32 %v1265, %v528
      %v1285 = vmul.f32 %v1267, %v529
      %v1286 = vmul.f32 %v1269, %v530
      %v1287 = vmul.f32 %v1271, %v531
      %v1288 = vmul.f32 %v1273, %v532
      %1289 = vrot.lane.b32.xlu0 %v1164, 2
      %v1290 = vpop.permute.xlu0 %1289
      %1291 = vrot.lane.b32.xlu0 %v1165, 2
      %v1292 = vpop.permute.xlu0 %1291
      %1293 = vrot.lane.b32.xlu0 %v1166, 2
      %v1294 = vpop.permute.xlu0 %1293
      %v1295 = vadd.f32 %v1290, %v658
      %v1296 = vadd.f32 %v1292, %v658
      %v1297 = vadd.f32 %v1294, %v658
      %v1298 = vmax.f32 %v1164, %v1295
      %v1299 = vmax.f32 %v1165, %v1296
      %v1300 = vmax.f32 %v1166, %v1297
      %1301 = vrot.lane.b32.xlu0 %v1164, 1
      %v1302 = vpop.permute.xlu0 %1301
      %1303 = vrot.lane.b32.xlu0 %v1165, 1
      %v1304 = vpop.permute.xlu0 %1303
      %1305 = vrot.lane.b32.xlu0 %v1166, 1
      %v1306 = vpop.permute.xlu0 %1305
      %v1307 = vadd.f32 %v1302, %v663
      %v1308 = vadd.f32 %v1304, %v663
      %v1309 = vadd.f32 %v1306, %v663
      %v1310 = vmax.f32 %v1298, %v1307
      %v1311 = vmax.f32 %v1299, %v1308
      %v1312 = vmax.f32 %v1300, %v1309
      %1313 = vrot.lane.b32.xlu0 %v1164, 127
      %v1314 = vpop.permute.xlu0 %1313
      %1315 = vrot.lane.b32.xlu0 %v1165, 127
      %v1316 = vpop.permute.xlu0 %1315
      %1317 = vrot.lane.b32.xlu0 %v1166, 127
      %v1318 = vpop.permute.xlu0 %1317
      %v1319 = vadd.f32 %v1314, %v668
      %v1320 = vadd.f32 %v1316, %v668
      %v1321 = vadd.f32 %v1318, %v668
      %v1322 = vmax.f32 %v1310, %v1319
      %v1323 = vmax.f32 %v1311, %v1320
      %v1324 = vmax.f32 %v1312, %v1321
      %1325 = vrot.lane.b32.xlu0 %v1164, 126
      %v1326 = vpop.permute.xlu0 %1325
      %1327 = vrot.lane.b32.xlu0 %v1165, 126
      %v1328 = vpop.permute.xlu0 %1327
      %1329 = vrot.lane.b32.xlu0 %v1166, 126
      %v1330 = vpop.permute.xlu0 %1329
      %v1331 = vadd.f32 %v1326, %v673
      %v1332 = vadd.f32 %v1328, %v673
      %v1333 = vadd.f32 %v1330, %v673
      %v1334 = vmax.f32 %v1322, %v1331
      %v1335 = vmax.f32 %v1323, %v1332
      %v1336 = vmax.f32 %v1324, %v1333
      %v1337 = vpack.c.bf16 %v1275, %v1274
      %v1338 = vpack.c.bf16 %v1277, %v1276
      %v1339 = vpack.c.bf16 %v1279, %v1278
      %v1340 = vpack.c.bf16 %v1281, %v1280
      %v1341 = vpack.c.bf16 %v1283, %v1282
      %v1342 = vpack.c.bf16 %v1285, %v1284
      %v1343 = vpack.c.bf16 %v1287, %v1286
      %v1344 = vpack.c.bf16 %v1334, %v1288
      %v1345 = vpack.c.bf16 %v1336, %v1335
      %1347 = vset.pattern.permute.xlu0 0
      %1348 = vperm.xlu0 %1347, %v1243
      %v1349 = vpop.permute.xlu0 %1348
      %1352 = vset.pattern.permute.xlu0 0
      %1353 = vperm.xlu0 %1352, %v1244
      %v1354 = vpop.permute.xlu0 %1353
      %1357 = vset.pattern.permute.xlu0 0
      %1358 = vperm.xlu0 %1357, %v1245
      %v1359 = vpop.permute.xlu0 %1358
      %v1364 = vunpack.c.l.b16 %v1239
      %v1365 = vunpack.c.h.b16 %v1239
      %v1366 = vunpack.c.l.b16 %v1240
      %v1367 = vunpack.c.h.b16 %v1240
      %v1368 = vunpack.c.l.b16 %v1241
      %v1369 = vunpack.c.h.b16 %v1241
      %v1370 = vpack.c.b16 %v1366, %v1364
      %v1371 = vpack.c.b16 %v1367, %v1365
      %v1372 = vpack.c.b16 %v1368, %v1368
      %v1373 = vpack.c.b16 %v1369, %v1369
      %v1377 = vsel %vm905, %v1371, 0
      %v1380 = vsel %vm905, %v1373, 0
      %1382 = vmatpush.bf16.msra.mxu0 %v1344
      %1383 = vmatpush.bf16.msra.mxu0 %v1343
      %1384 = vmatpush.bf16.msra.mxu0 %v1342
      %1385 = vmatpush.bf16.msra.mxu0 %v1341
      %1386 = vmatpush.bf16.msra.mxu0 %v1340
      %1387 = vmatpush.bf16.msra.mxu0 %v1339
      %1388 = vmatpush.bf16.msra.mxu0 %v1338
      %1389 = vmatpush.bf16.msra.mxu0 %v1337
      %1390 = vmatmul.bf16.gmra.mxu0 %v1370
      %v1391 = vpop.f32.mrf.mxu0
      %v1392 = vadd.f32 %v1349, %v1391
      %v1393 = vpop.f32.mrf.mxu0
      %v1394 = vadd.f32 %v1354, %v1393
      %1395 = vmatmul.bf16.gmra.mxu0 %v1372
      %v1396 = vpop.f32.mrf.mxu0
      %v1397 = vadd.f32 %v1359, %v1396
      %v1398 = vpop.f32.mrf.mxu0
      %1399 = vdwg.mxu0
      %1400 = vmatpush.bf16.msra.mxu0 0
      %1401 = vmatpush.bf16.msra.mxu0 0
      %1402 = vmatpush.bf16.msra.mxu0 0
      %1403 = vmatpush.bf16.msra.mxu0 0
      %1404 = vmatpush.bf16.msra.mxu0 0
      %1405 = vmatpush.bf16.msra.mxu0 0
      %1406 = vmatpush.bf16.msra.mxu0 0
      %1407 = vmatpush.bf16.msra.mxu0 %v1345
      %1408 = vmatmul.bf16.gmra.mxu0 %v1377
      %v1409 = vpop.f32.mrf.mxu0
      %v1410 = vadd.f32 %v1392, %v1409
      %v1411 = vpop.f32.mrf.mxu0
      %v1412 = vadd.f32 %v1394, %v1411
      %1413 = vmatmul.bf16.gmra.mxu0 %v1380
      %v1414 = vpop.f32.mrf.mxu0
      %v1415 = vadd.f32 %v1397, %v1414
      %v1416 = vpop.f32.mrf.mxu0
      %1417 = vdwg.mxu0
      %v1418 = vmax.f32 %v1410, 0.0
      %v1419 = vmax.f32 %v1412, 0.0
      %v1420 = vmax.f32 %v1415, 0.0
      %s1421 = scalar_lea.vmem %s8, 8
      %v1422 = vld [vmem:[%s1421] sm:$0xf]
      %v1423 = vpack.c.bf16 %v1419, %v1418
      %v1424 = vpack.c.bf16 %v1420, %v1420
      %s1425 = scalar_lea.vmem %s9, 16
      %v1426 = vld [vmem:[%s1425] sm:$0xff]
      %1428 = vset.pattern.permute.xlu0 0
      %1429 = vperm.xlu0 %1428, %v1426
      %v1430 = vpop.permute.xlu0 %1429
      %v1433 = vsel %vm748, %v1422, 0
      %v1436 = vsel %vm752, %v1424, 0
      %1438 = vmatpush.bf16.msra.mxu0 0
      %1439 = vmatpush.bf16.msra.mxu0 0
      %1440 = vmatpush.bf16.msra.mxu0 0
      %1441 = vmatpush.bf16.msra.mxu0 0
      %1442 = vmatpush.bf16.msra.mxu0 0
      %1443 = vmatpush.bf16.msra.mxu0 0
      %1444 = vmatpush.bf16.msra.mxu0 %v1436
      %1445 = vmatpush.bf16.msra.mxu0 %v1423
      %1446 = vmatmul.bf16.gmra.mxu0 %v1433
      %v1447 = vpop.f32.mrf.mxu0
      %v1448 = vadd.f32 %v1430, %v1447
      %v1449 = vpop.f32.mrf.mxu0
      %1450 = vdwg.mxu0
      %s1451 = scalar_lea.vmem %s10, 72
      %v1452 = vld [vmem:[%s1451] sm:$0xff]
      %v1453 = vld [vmem:[%s1451 + $0x8] sm:$0xff]
      %v1454 = vld [vmem:[%s1451 + $0x10] sm:$0xff]
      %s1455 = scalar_lea.vmem %s11, 72
      %v1456 = vld [vmem:[%s1455] sm:$0xff]
      %v1457 = vld [vmem:[%s1455 + $0x8] sm:$0xff]
      %v1458 = vld [vmem:[%s1455 + $0x10] sm:$0xff]
      %1459 = vrot.lane.b32.xlu0 %v1448, 7
      %v1460 = vpop.permute.xlu0 %1459
      %1461 = vrot.lane.b32.xlu0 %v1448, 6
      %v1462 = vpop.permute.xlu0 %1461
      %1463 = vrot.lane.b32.xlu0 %v1448, 5
      %v1464 = vpop.permute.xlu0 %1463
      %1465 = vrot.lane.b32.xlu0 %v1448, 4
      %v1466 = vpop.permute.xlu0 %1465
      %1467 = vrot.lane.b32.xlu0 %v1448, 3
      %v1468 = vpop.permute.xlu0 %1467
      %1469 = vrot.lane.b32.xlu0 %v1448, 2
      %v1470 = vpop.permute.xlu0 %1469
      %1471 = vrot.lane.b32.xlu0 %v1448, 1
      %v1472 = vpop.permute.xlu0 %1471
      %1473 = vrot.lane.b32.xlu0 %v1448, 127
      %v1474 = vpop.permute.xlu0 %1473
      %1475 = vrot.lane.b32.xlu0 %v1448, 126
      %v1476 = vpop.permute.xlu0 %1475
      %1477 = vrot.lane.b32.xlu0 %v1448, 125
      %v1478 = vpop.permute.xlu0 %1477
      %1479 = vrot.lane.b32.xlu0 %v1448, 124
      %v1480 = vpop.permute.xlu0 %1479
      %1481 = vrot.lane.b32.xlu0 %v1448, 123
      %v1482 = vpop.permute.xlu0 %1481
      %1483 = vrot.lane.b32.xlu0 %v1448, 122
      %v1484 = vpop.permute.xlu0 %1483
      %1485 = vrot.lane.b32.xlu0 %v1448, 121
      %v1486 = vpop.permute.xlu0 %1485
      %v1487 = vmul.f32 %v1460, %v518
      %v1488 = vmul.f32 %v1462, %v519
      %v1489 = vmul.f32 %v1464, %v520
      %v1490 = vmul.f32 %v1466, %v521
      %v1491 = vmul.f32 %v1468, %v522
      %v1492 = vmul.f32 %v1470, %v523
      %v1493 = vmul.f32 %v1472, %v524
      %v1494 = vmul.f32 %v1448, %v525
      %v1495 = vmul.f32 %v1474, %v526
      %v1496 = vmul.f32 %v1476, %v527
      %v1497 = vmul.f32 %v1478, %v528
      %v1498 = vmul.f32 %v1480, %v529
      %v1499 = vmul.f32 %v1482, %v530
      %v1500 = vmul.f32 %v1484, %v531
      %v1501 = vmul.f32 %v1486, %v532
      %1502 = vrot.lane.b32.xlu0 %v1418, 2
      %v1503 = vpop.permute.xlu0 %1502
      %1504 = vrot.lane.b32.xlu0 %v1419, 2
      %v1505 = vpop.permute.xlu0 %1504
      %1506 = vrot.lane.b32.xlu0 %v1420, 2
      %v1507 = vpop.permute.xlu0 %1506
      %v1508 = vadd.f32 %v1503, %v658
      %v1509 = vadd.f32 %v1505, %v658
      %v1510 = vadd.f32 %v1507, %v658
      %v1511 = vmax.f32 %v1418, %v1508
      %v1512 = vmax.f32 %v1419, %v1509
      %v1513 = vmax.f32 %v1420, %v1510
      %1514 = vrot.lane.b32.xlu0 %v1418, 1
      %v1515 = vpop.permute.xlu0 %1514
      %1516 = vrot.lane.b32.xlu0 %v1419, 1
      %v1517 = vpop.permute.xlu0 %1516
      %1518 = vrot.lane.b32.xlu0 %v1420, 1
      %v1519 = vpop.permute.xlu0 %1518
      %v1520 = vadd.f32 %v1515, %v663
      %v1521 = vadd.f32 %v1517, %v663
      %v1522 = vadd.f32 %v1519, %v663
      %v1523 = vmax.f32 %v1511, %v1520
      %v1524 = vmax.f32 %v1512, %v1521
      %v1525 = vmax.f32 %v1513, %v1522
      %1526 = vrot.lane.b32.xlu0 %v1418, 127
      %v1527 = vpop.permute.xlu0 %1526
      %1528 = vrot.lane.b32.xlu0 %v1419, 127
      %v1529 = vpop.permute.xlu0 %1528
      %1530 = vrot.lane.b32.xlu0 %v1420, 127
      %v1531 = vpop.permute.xlu0 %1530
      %v1532 = vadd.f32 %v1527, %v668
      %v1533 = vadd.f32 %v1529, %v668
      %v1534 = vadd.f32 %v1531, %v668
      %v1535 = vmax.f32 %v1523, %v1532
      %v1536 = vmax.f32 %v1524, %v1533
      %v1537 = vmax.f32 %v1525, %v1534
      %1538 = vrot.lane.b32.xlu0 %v1418, 126
      %v1539 = vpop.permute.xlu0 %1538
      %1540 = vrot.lane.b32.xlu0 %v1419, 126
      %v1541 = vpop.permute.xlu0 %1540
      %1542 = vrot.lane.b32.xlu0 %v1420, 126
      %v1543 = vpop.permute.xlu0 %1542
      %v1544 = vadd.f32 %v1539, %v673
      %v1545 = vadd.f32 %v1541, %v673
      %v1546 = vadd.f32 %v1543, %v673
      %v1547 = vmax.f32 %v1535, %v1544
      %v1548 = vmax.f32 %v1536, %v1545
      %v1549 = vmax.f32 %v1537, %v1546
      %v1550 = vpack.c.bf16 %v1488, %v1487
      %v1551 = vpack.c.bf16 %v1490, %v1489
      %v1552 = vpack.c.bf16 %v1492, %v1491
      %v1553 = vpack.c.bf16 %v1494, %v1493
      %v1554 = vpack.c.bf16 %v1496, %v1495
      %v1555 = vpack.c.bf16 %v1498, %v1497
      %v1556 = vpack.c.bf16 %v1500, %v1499
      %v1557 = vpack.c.bf16 %v1547, %v1501
      %v1558 = vpack.c.bf16 %v1549, %v1548
      %1560 = vset.pattern.permute.xlu0 0
      %1561 = vperm.xlu0 %1560, %v1456
      %v1562 = vpop.permute.xlu0 %1561
      %1565 = vset.pattern.permute.xlu0 0
      %1566 = vperm.xlu0 %1565, %v1457
      %v1567 = vpop.permute.xlu0 %1566
      %1570 = vset.pattern.permute.xlu0 0
      %1571 = vperm.xlu0 %1570, %v1458
      %v1572 = vpop.permute.xlu0 %1571
      %v1577 = vunpack.c.l.b16 %v1452
      %v1578 = vunpack.c.h.b16 %v1452
      %v1579 = vunpack.c.l.b16 %v1453
      %v1580 = vunpack.c.h.b16 %v1453
      %v1581 = vunpack.c.l.b16 %v1454
      %v1582 = vunpack.c.h.b16 %v1454
      %v1583 = vpack.c.b16 %v1579, %v1577
      %v1584 = vpack.c.b16 %v1580, %v1578
      %v1585 = vpack.c.b16 %v1581, %v1581
      %v1586 = vpack.c.b16 %v1582, %v1582
      %v1590 = vsel %vm905, %v1584, 0
      %v1593 = vsel %vm905, %v1586, 0
      %1595 = vmatpush.bf16.msra.mxu0 %v1557
      %1596 = vmatpush.bf16.msra.mxu0 %v1556
      %1597 = vmatpush.bf16.msra.mxu0 %v1555
      %1598 = vmatpush.bf16.msra.mxu0 %v1554
      %1599 = vmatpush.bf16.msra.mxu0 %v1553
      %1600 = vmatpush.bf16.msra.mxu0 %v1552
      %1601 = vmatpush.bf16.msra.mxu0 %v1551
      %1602 = vmatpush.bf16.msra.mxu0 %v1550
      %1603 = vmatmul.bf16.gmra.mxu0 %v1583
      %v1604 = vpop.f32.mrf.mxu0
      %v1605 = vadd.f32 %v1562, %v1604
      %v1606 = vpop.f32.mrf.mxu0
      %v1607 = vadd.f32 %v1567, %v1606
      %1608 = vmatmul.bf16.gmra.mxu0 %v1585
      %v1609 = vpop.f32.mrf.mxu0
      %v1610 = vadd.f32 %v1572, %v1609
      %v1611 = vpop.f32.mrf.mxu0
      %1612 = vdwg.mxu0
      %1613 = vmatpush.bf16.msra.mxu0 0
      %1614 = vmatpush.bf16.msra.mxu0 0
      %1615 = vmatpush.bf16.msra.mxu0 0
      %1616 = vmatpush.bf16.msra.mxu0 0
      %1617 = vmatpush.bf16.msra.mxu0 0
      %1618 = vmatpush.bf16.msra.mxu0 0
      %1619 = vmatpush.bf16.msra.mxu0 0
      %1620 = vmatpush.bf16.msra.mxu0 %v1558
      %1621 = vmatmul.bf16.gmra.mxu0 %v1590
      %v1622 = vpop.f32.mrf.mxu0
      %v1623 = vadd.f32 %v1605, %v1622
      %v1624 = vpop.f32.mrf.mxu0
      %v1625 = vadd.f32 %v1607, %v1624
      %1626 = vmatmul.bf16.gmra.mxu0 %v1593
      %v1627 = vpop.f32.mrf.mxu0
      %v1628 = vadd.f32 %v1610, %v1627
      %v1629 = vpop.f32.mrf.mxu0
      %1630 = vdwg.mxu0
      %v1631 = vmax.f32 %v1623, 0.0
      %v1632 = vmax.f32 %v1625, 0.0
      %v1633 = vmax.f32 %v1628, 0.0
      %s1634 = scalar_lea.vmem %s8, 12
      %v1635 = vld [vmem:[%s1634] sm:$0xf]
      %v1636 = vpack.c.bf16 %v1632, %v1631
      %v1637 = vpack.c.bf16 %v1633, %v1633
      %s1638 = scalar_lea.vmem %s9, 24
      %v1639 = vld [vmem:[%s1638] sm:$0xff]
      %1641 = vset.pattern.permute.xlu0 0
      %1642 = vperm.xlu0 %1641, %v1639
      %v1643 = vpop.permute.xlu0 %1642
      %v1646 = vsel %vm748, %v1635, 0
      %v1649 = vsel %vm752, %v1637, 0
      %1651 = vmatpush.bf16.msra.mxu0 0
      %1652 = vmatpush.bf16.msra.mxu0 0
      %1653 = vmatpush.bf16.msra.mxu0 0
      %1654 = vmatpush.bf16.msra.mxu0 0
      %1655 = vmatpush.bf16.msra.mxu0 0
      %1656 = vmatpush.bf16.msra.mxu0 0
      %1657 = vmatpush.bf16.msra.mxu0 %v1649
      %1658 = vmatpush.bf16.msra.mxu0 %v1636
      %1659 = vmatmul.bf16.gmra.mxu0 %v1646
      %v1660 = vpop.f32.mrf.mxu0
      %v1661 = vadd.f32 %v1643, %v1660
      %v1662 = vpop.f32.mrf.mxu0
      %1663 = vdwg.mxu0
      %s1664 = scalar_lea.vmem %s10, 96
      %v1665 = vld [vmem:[%s1664] sm:$0xff]
      %v1666 = vld [vmem:[%s1664 + $0x8] sm:$0xff]
      %v1667 = vld [vmem:[%s1664 + $0x10] sm:$0xff]
      %s1668 = scalar_lea.vmem %s11, 96
      %v1669 = vld [vmem:[%s1668] sm:$0xff]
      %v1670 = vld [vmem:[%s1668 + $0x8] sm:$0xff]
      %v1671 = vld [vmem:[%s1668 + $0x10] sm:$0xff]
      %1672 = vrot.lane.b32.xlu0 %v1661, 7
      %v1673 = vpop.permute.xlu0 %1672
      %1674 = vrot.lane.b32.xlu0 %v1661, 6
      %v1675 = vpop.permute.xlu0 %1674
      %1676 = vrot.lane.b32.xlu0 %v1661, 5
      %v1677 = vpop.permute.xlu0 %1676
      %1678 = vrot.lane.b32.xlu0 %v1661, 4
      %v1679 = vpop.permute.xlu0 %1678
      %1680 = vrot.lane.b32.xlu0 %v1661, 3
      %v1681 = vpop.permute.xlu0 %1680
      %1682 = vrot.lane.b32.xlu0 %v1661, 2
      %v1683 = vpop.permute.xlu0 %1682
      %1684 = vrot.lane.b32.xlu0 %v1661, 1
      %v1685 = vpop.permute.xlu0 %1684
      %1686 = vrot.lane.b32.xlu0 %v1661, 127
      %v1687 = vpop.permute.xlu0 %1686
      %1688 = vrot.lane.b32.xlu0 %v1661, 126
      %v1689 = vpop.permute.xlu0 %1688
      %1690 = vrot.lane.b32.xlu0 %v1661, 125
      %v1691 = vpop.permute.xlu0 %1690
      %1692 = vrot.lane.b32.xlu0 %v1661, 124
      %v1693 = vpop.permute.xlu0 %1692
      %1694 = vrot.lane.b32.xlu0 %v1661, 123
      %v1695 = vpop.permute.xlu0 %1694
      %1696 = vrot.lane.b32.xlu0 %v1661, 122
      %v1697 = vpop.permute.xlu0 %1696
      %1698 = vrot.lane.b32.xlu0 %v1661, 121
      %v1699 = vpop.permute.xlu0 %1698
      %v1700 = vmul.f32 %v1673, %v518
      %v1701 = vmul.f32 %v1675, %v519
      %v1702 = vmul.f32 %v1677, %v520
      %v1703 = vmul.f32 %v1679, %v521
      %v1704 = vmul.f32 %v1681, %v522
      %v1705 = vmul.f32 %v1683, %v523
      %v1706 = vmul.f32 %v1685, %v524
      %v1707 = vmul.f32 %v1661, %v525
      %v1708 = vmul.f32 %v1687, %v526
      %v1709 = vmul.f32 %v1689, %v527
      %v1710 = vmul.f32 %v1691, %v528
      %v1711 = vmul.f32 %v1693, %v529
      %v1712 = vmul.f32 %v1695, %v530
      %v1713 = vmul.f32 %v1697, %v531
      %v1714 = vmul.f32 %v1699, %v532
      %1715 = vrot.lane.b32.xlu0 %v1631, 2
      %v1716 = vpop.permute.xlu0 %1715
      %1717 = vrot.lane.b32.xlu0 %v1632, 2
      %v1718 = vpop.permute.xlu0 %1717
      %1719 = vrot.lane.b32.xlu0 %v1633, 2
      %v1720 = vpop.permute.xlu0 %1719
      %v1721 = vadd.f32 %v1716, %v658
      %v1722 = vadd.f32 %v1718, %v658
      %v1723 = vadd.f32 %v1720, %v658
      %v1724 = vmax.f32 %v1631, %v1721
      %v1725 = vmax.f32 %v1632, %v1722
      %v1726 = vmax.f32 %v1633, %v1723
      %1727 = vrot.lane.b32.xlu0 %v1631, 1
      %v1728 = vpop.permute.xlu0 %1727
      %1729 = vrot.lane.b32.xlu0 %v1632, 1
      %v1730 = vpop.permute.xlu0 %1729
      %1731 = vrot.lane.b32.xlu0 %v1633, 1
      %v1732 = vpop.permute.xlu0 %1731
      %v1733 = vadd.f32 %v1728, %v663
      %v1734 = vadd.f32 %v1730, %v663
      %v1735 = vadd.f32 %v1732, %v663
      %v1736 = vmax.f32 %v1724, %v1733
      %v1737 = vmax.f32 %v1725, %v1734
      %v1738 = vmax.f32 %v1726, %v1735
      %1739 = vrot.lane.b32.xlu0 %v1631, 127
      %v1740 = vpop.permute.xlu0 %1739
      %1741 = vrot.lane.b32.xlu0 %v1632, 127
      %v1742 = vpop.permute.xlu0 %1741
      %1743 = vrot.lane.b32.xlu0 %v1633, 127
      %v1744 = vpop.permute.xlu0 %1743
      %v1745 = vadd.f32 %v1740, %v668
      %v1746 = vadd.f32 %v1742, %v668
      %v1747 = vadd.f32 %v1744, %v668
      %v1748 = vmax.f32 %v1736, %v1745
      %v1749 = vmax.f32 %v1737, %v1746
      %v1750 = vmax.f32 %v1738, %v1747
      %1751 = vrot.lane.b32.xlu0 %v1631, 126
      %v1752 = vpop.permute.xlu0 %1751
      %1753 = vrot.lane.b32.xlu0 %v1632, 126
      %v1754 = vpop.permute.xlu0 %1753
      %1755 = vrot.lane.b32.xlu0 %v1633, 126
      %v1756 = vpop.permute.xlu0 %1755
      %v1757 = vadd.f32 %v1752, %v673
      %v1758 = vadd.f32 %v1754, %v673
      %v1759 = vadd.f32 %v1756, %v673
      %v1760 = vmax.f32 %v1748, %v1757
      %v1761 = vmax.f32 %v1749, %v1758
      %v1762 = vmax.f32 %v1750, %v1759
      %v1763 = vpack.c.bf16 %v1701, %v1700
      %v1764 = vpack.c.bf16 %v1703, %v1702
      %v1765 = vpack.c.bf16 %v1705, %v1704
      %v1766 = vpack.c.bf16 %v1707, %v1706
      %v1767 = vpack.c.bf16 %v1709, %v1708
      %v1768 = vpack.c.bf16 %v1711, %v1710
      %v1769 = vpack.c.bf16 %v1713, %v1712
      %v1770 = vpack.c.bf16 %v1760, %v1714
      %v1771 = vpack.c.bf16 %v1762, %v1761
      %1773 = vset.pattern.permute.xlu0 0
      %1774 = vperm.xlu0 %1773, %v1669
      %v1775 = vpop.permute.xlu0 %1774
      %1778 = vset.pattern.permute.xlu0 0
      %1779 = vperm.xlu0 %1778, %v1670
      %v1780 = vpop.permute.xlu0 %1779
      %1783 = vset.pattern.permute.xlu0 0
      %1784 = vperm.xlu0 %1783, %v1671
      %v1785 = vpop.permute.xlu0 %1784
      %v1790 = vunpack.c.l.b16 %v1665
      %v1791 = vunpack.c.h.b16 %v1665
      %v1792 = vunpack.c.l.b16 %v1666
      %v1793 = vunpack.c.h.b16 %v1666
      %v1794 = vunpack.c.l.b16 %v1667
      %v1795 = vunpack.c.h.b16 %v1667
      %v1796 = vpack.c.b16 %v1792, %v1790
      %v1797 = vpack.c.b16 %v1793, %v1791
      %v1798 = vpack.c.b16 %v1794, %v1794
      %v1799 = vpack.c.b16 %v1795, %v1795
      %v1803 = vsel %vm905, %v1797, 0
      %v1806 = vsel %vm905, %v1799, 0
      %1808 = vmatpush.bf16.msra.mxu0 %v1770
      %1809 = vmatpush.bf16.msra.mxu0 %v1769
      %1810 = vmatpush.bf16.msra.mxu0 %v1768
      %1811 = vmatpush.bf16.msra.mxu0 %v1767
      %1812 = vmatpush.bf16.msra.mxu0 %v1766
      %1813 = vmatpush.bf16.msra.mxu0 %v1765
      %1814 = vmatpush.bf16.msra.mxu0 %v1764
      %1815 = vmatpush.bf16.msra.mxu0 %v1763
      %1816 = vmatmul.bf16.gmra.mxu0 %v1796
      %v1817 = vpop.f32.mrf.mxu0
      %v1818 = vadd.f32 %v1775, %v1817
      %v1819 = vpop.f32.mrf.mxu0
      %v1820 = vadd.f32 %v1780, %v1819
      %1821 = vmatmul.bf16.gmra.mxu0 %v1798
      %v1822 = vpop.f32.mrf.mxu0
      %v1823 = vadd.f32 %v1785, %v1822
      %v1824 = vpop.f32.mrf.mxu0
      %1825 = vdwg.mxu0
      %1826 = vmatpush.bf16.msra.mxu0 0
      %1827 = vmatpush.bf16.msra.mxu0 0
      %1828 = vmatpush.bf16.msra.mxu0 0
      %1829 = vmatpush.bf16.msra.mxu0 0
      %1830 = vmatpush.bf16.msra.mxu0 0
      %1831 = vmatpush.bf16.msra.mxu0 0
      %1832 = vmatpush.bf16.msra.mxu0 0
      %1833 = vmatpush.bf16.msra.mxu0 %v1771
      %1834 = vmatmul.bf16.gmra.mxu0 %v1803
      %v1835 = vpop.f32.mrf.mxu0
      %v1836 = vadd.f32 %v1818, %v1835
      %v1837 = vpop.f32.mrf.mxu0
      %v1838 = vadd.f32 %v1820, %v1837
      %1839 = vmatmul.bf16.gmra.mxu0 %v1806
      %v1840 = vpop.f32.mrf.mxu0
      %v1841 = vadd.f32 %v1823, %v1840
      %v1842 = vpop.f32.mrf.mxu0
      %1843 = vdwg.mxu0
      %v1844 = vmax.f32 %v1836, 0.0
      %v1845 = vmax.f32 %v1838, 0.0
      %v1846 = vmax.f32 %v1841, 0.0
      %v1847 = vadd.f32 %v1844, %v1235
      %v1848 = vadd.f32 %v1845, %v1236
      %v1849 = vadd.f32 %v1846, %v1237
      %v1850 = vpack.c.bf16 %v1848, %v1847
      %v1851 = vpack.c.bf16 %v1849, %v1849
      %v1852 = vld [vmem:[%s3] sm:$0xf]
      %v1853 = vld [vmem:[%s3 + $0x4] sm:$0xf]
      %v1854 = vld [vmem:[%s3 + $0x8] sm:$0xf]
      %v1855 = vld [vmem:[%s3 + $0xc] sm:$0xf]
      %v1856 = vld [vmem:[%s3 + $0x10] sm:$0xf]
      %v1857 = vld [vmem:[%s3 + $0x14] sm:$0xf]
      %v1858 = vld [vmem:[%s3 + $0x18] sm:$0xf]
      %v1859 = vld [vmem:[%s3 + $0x1c] sm:$0xf]
      %v1860 = vld [vmem:[%s3 + $0x20] sm:$0xf]
      %v1861 = vld [vmem:[%s3 + $0x24] sm:$0xf]
      %v1862 = vld [vmem:[%s3 + $0x28] sm:$0xf]
      %v1863 = vld [vmem:[%s3 + $0x2c] sm:$0xf]
      %v1864 = vld [vmem:[%s3 + $0x30] sm:$0xf]
      %v1865 = vld [vmem:[%s3 + $0x34] sm:$0xf]
      %v1866 = vld [vmem:[%s3 + $0x38] sm:$0xf]
      %v1867 = vld [vmem:[%s3 + $0x3c] sm:$0xf]
      %v1884 = vunpack.c.l.b16 %v1852
      %v1885 = vunpack.c.l.b16 %v1853
      %v1886 = vunpack.c.l.b16 %v1854
      %v1887 = vunpack.c.l.b16 %v1855
      %v1888 = vunpack.c.l.b16 %v1856
      %v1889 = vunpack.c.l.b16 %v1857
      %v1890 = vunpack.c.l.b16 %v1858
      %v1891 = vunpack.c.l.b16 %v1859
      %v1892 = vunpack.c.l.b16 %v1860
      %v1893 = vunpack.c.l.b16 %v1861
      %v1894 = vunpack.c.l.b16 %v1862
      %v1895 = vunpack.c.l.b16 %v1863
      %v1896 = vunpack.c.l.b16 %v1864
      %v1897 = vunpack.c.l.b16 %v1865
      %v1898 = vunpack.c.l.b16 %v1866
      %v1899 = vunpack.c.l.b16 %v1867
      %v1900 = vpack.c.b16 %v1885, %v1884
      %v1901 = vpack.c.b16 %v1887, %v1886
      %v1902 = vpack.c.b16 %v1889, %v1888
      %v1903 = vpack.c.b16 %v1891, %v1890
      %v1904 = vpack.c.b16 %v1893, %v1892
      %v1905 = vpack.c.b16 %v1895, %v1894
      %v1906 = vpack.c.b16 %v1897, %v1896
      %v1907 = vpack.c.b16 %v1899, %v1898
      %1916 = vmatpush.bf16.msra.mxu0 %v1907
      %1917 = vmatpush.bf16.msra.mxu0 %v1906
      %1918 = vmatpush.bf16.msra.mxu0 %v1905
      %1919 = vmatpush.bf16.msra.mxu0 %v1904
      %1920 = vmatpush.bf16.msra.mxu0 %v1903
      %1921 = vmatpush.bf16.msra.mxu0 %v1902
      %1922 = vmatpush.bf16.msra.mxu0 %v1901
      %1923 = vmatpush.bf16.msra.mxu0 %v1900
      %1924 = vmatmul.bf16.gmra.mxu0 %v1850
      %v1925 = vpop.f32.mrf.mxu0
      %v1926 = vadd.f32 0.0, %v1925
      %v1927 = vpop.f32.mrf.mxu0
      %v1928 = vadd.f32 0.0, %v1927
      %1929 = vmatmul.bf16.gmra.mxu0 %v1851
      %v1930 = vpop.f32.mrf.mxu0
      %v1931 = vadd.f32 0.0, %v1930
      %v1932 = vpop.f32.mrf.mxu0
      %1933 = vdwg.mxu0
      %v1934 = vld [vmem:[%s14] sm:$0x3]
      %v1935 = vpack.c.bf16 %v1928, %v1926
      %v1936 = vpack.c.bf16 %v1931, %v1931
      %v1937 = vld [vmem:[%s15] sm:$0x7]
      %1939 = vset.pattern.permute.xlu0 0
      %1940 = vperm.xlu0 %1939, %v1937
      %v1941 = vpop.permute.xlu0 %1940
      %v1944 = vsel %vm748, %v1934, 0
      %v1947 = vsel %vm752, %v1936, 0
      %1949 = vmatpush.bf16.msra.mxu0 0
      %1950 = vmatpush.bf16.msra.mxu0 0
      %1951 = vmatpush.bf16.msra.mxu0 0
      %1952 = vmatpush.bf16.msra.mxu0 0
      %1953 = vmatpush.bf16.msra.mxu0 0
      %1954 = vmatpush.bf16.msra.mxu0 0
      %1955 = vmatpush.bf16.msra.mxu0 %v1947
      %1956 = vmatpush.bf16.msra.mxu0 %v1935
      %1957 = vmatmul.bf16.gmra.mxu0 %v1944
      %v1958 = vpop.f32.mrf.mxu0
      %v1959 = vadd.f32 %v1941, %v1958
      %v1960 = vpop.f32.mrf.mxu0
      %1961 = vdwg.mxu0
      %vm1962 = vcmask 59392
      %v1963 = vsel %vm1962, %v1959, -inf
      %v1964 = vrot.slane %v1963, 4
      %v1965 = vmax.f32 %v1963, %v1964
      %v1966 = vrot.slane %v1965, 2
      %v1967 = vmax.f32 %v1965, %v1966
      %v1968 = vrot.slane %v1967, 1
      %v1969 = vmax.f32 %v1967, %v1968
      %v1970 = vsub.f32 %v1959, %v1969
      %v1971 = vmul.f32 %v1970, 1.442695
      %v1972 = vpow.pop %v1971
      %v1973 = vsel %vm1962, %v1972, 0.0
      %v1974 = vrot.slane %v1973, 4
      %v1975 = vadd.f32 %v1973, %v1974
      %v1976 = vrot.slane %v1975, 2
      %v1977 = vadd.f32 %v1975, %v1976
      %v1978 = vrot.slane %v1977, 1
      %v1979 = vadd.f32 %v1977, %v1978
      %v1980 = vlog2.pop %v1979
      %v1981 = vmul.f32 %v1980, 0.6931472
      %v1982 = vsub.f32 %v1970, %v1981
      %1983 = vst.msk [vmem:[%s516] sm:$0x7] %vm1962, %v1982
      %p1984 = scmp.lt.s32.totalorder %s27, 1
      %s1985 = scalar_select %p1984, %s27, 1
      %s1986 = smul.addr %s1985, 4
      %s1987 = scalar_lea.vmem %s16, %s1986
      // Predicated region
      $region85: #{eeg_inception_mi_forward.1} parent=83 // pred_check
        %p1988 = pneg %p386
      $region86: #{eeg_inception_mi_forward.1} parent=83 // pred_check_branch
        %1990 = sbr.rel (%p1988) target = $region88
      $region87: #{eeg_inception_mi_forward.1} parent=83 // pred_region
        _
      $region88: #{eeg_inception_mi_forward.1} parent=83 // pred_fallthru
        _
    $region84: #{eeg_inception_mi_forward.1} parent=5 // pred_fallthru
      _
    %p1991 = scmp.le.s32.totalorder 2, %s22
    // Predicated region
    $region89: #{eeg_inception_mi_forward.1} parent=5 // pred_check
      %p1992 = pneg %p1991
    $region90: #{eeg_inception_mi_forward.1} parent=5 // pred_check_branch
      %1994 = sbr.rel (%p1992) target = $region92
    $region91: #{eeg_inception_mi_forward.1} parent=5 // pred_region
      %s1995 = ssub.s32 %s22, 2
      // Predicated region
      $region93: #{eeg_inception_mi_forward.1} parent=91 // pred_check
        %p1996 = pneg %p392
      $region94: #{eeg_inception_mi_forward.1} parent=91 // pred_check_branch
        %1998 = sbr.rel (%p1996) target = $region96
      $region95: #{eeg_inception_mi_forward.1} parent=91 // pred_region
        %p1999 = scmp.lt.s32.totalorder %s28, 1
        %s2000 = scalar_select %p1999, %s28, 1
        %s2001 = smul.addr %s2000, 4
        %s2002 = scalar_lea.vmem %s16, %s2001
      $region96: #{eeg_inception_mi_forward.1} parent=91 // pred_fallthru
        _
    $region92: #{eeg_inception_mi_forward.1} parent=5 // pred_fallthru
      _
  $region6: #{eeg_inception_mi_forward.1} parent=0 // loop_footer
    %s26 = sadd.s32 1, %s22
  $region7: #{eeg_inception_mi_forward.1} parent=0 // loop_footer_branch
    %21 = sbr.rel target = $region3
  $region8: #{eeg_inception_mi_forward.1} parent=0 // loop_exit
    _

</llo_original>
